<compile_context>
chip_gen: v7x
topology: tpu7x:2x2x1
jax: 0.10.0
libtpu: 0.0.40
codegen_flags: <defaults>
</compile_context>

<pallas_src>
import math

import jax
import jax.numpy as jnp
import numpy as np
from jax.experimental import pallas as pl
from jax.experimental.pallas import tpu as pltpu


# ----------------------------------------------------------------------------
# Clenshaw-Curtis quadrature constants (UMNN ParallelNeuralIntegral)
# ----------------------------------------------------------------------------
def _compute_cc_weights(nb_steps):
    lam = np.arange(0, nb_steps + 1, 1).reshape(-1, 1)
    lam = np.cos((lam @ lam.T) * math.pi / nb_steps)
    lam[:, 0] = 0.5
    lam[:, -1] = 0.5 * lam[:, -1]
    lam = lam * 2.0 / nb_steps
    W = np.arange(0, nb_steps + 1, 1).reshape(-1, 1)
    W[np.arange(1, nb_steps + 1, 2)] = 0
    W = 2.0 / (1 - W ** 2)
    W[0] = 1
    W[np.arange(1, nb_steps + 1, 2)] = 0
    cc_weights = (lam.T @ W).astype(np.float32)                        # (S, 1)
    steps = np.cos(np.arange(0, nb_steps + 1, 1).reshape(-1, 1)
                   * math.pi / nb_steps).astype(np.float32)            # (S, 1)
    return cc_weights, steps


# ----------------------------------------------------------------------------
# Kernel 1: AlphaAttention embedding (one shot, everything resident in VMEM)
# ----------------------------------------------------------------------------
def _embed_kernel(x_ref, alpha_ref,
                  qw1, qb1, qw2, qb2,
                  kw1, kb1, kw2, kb2, kw3, kb3,
                  vw1, vb1, vw2, vb2, vw3, vb3,
                  z_ref):
    f32 = jnp.float32
    x = x_ref[...]                     # (B, F+A)
    alpha = alpha_ref[...]             # (B, 1)

    def mlp(inp, w1, b1, w2, b2, w3, b3):
        h = jnp.maximum(jnp.dot(inp, w1[...], preferred_element_type=f32) + b1[...], 0.0)
        h = jnp.maximum(jnp.dot(h, w2[...], preferred_element_type=f32) + b2[...], 0.0)
        return jnp.dot(h, w3[...], preferred_element_type=f32) + b3[...]

    # Q = AlphaEmbeddingNet(alpha): the (B,1)@(1,64) layer is a VPU broadcast.
    qh = jnp.maximum(alpha * qw1[...] + qb1[...], 0.0)                   # (B, 64)
    q = jnp.dot(qh, qw2[...], preferred_element_type=f32) + qb2[...]      # (B, E)
    k = mlp(x, kw1, kb1, kw2, kb2, kw3, kb3)                              # (B, E)
    v = mlp(x, vw1, vb1, vw2, vb2, vw3, vb3)                              # (B, E)

    # attention[b,i] = sum_j softmax_j(Q[b,i]*K[b,j]/sqrt(E)) * V[b,j]
    E = q.shape[-1]
    inv_sqrt_dk = 1.0 / math.sqrt(E)
    s = q[:, :, None] * (k[:, None, :] * inv_sqrt_dk)                     # (B, E, E)
    s = s - jnp.max(s, axis=-1, keepdims=True)
    p = jnp.exp(s)
    p = p / jnp.sum(p, axis=-1, keepdims=True)
    z_ref[...] = jnp.sum(p * v[:, None, :], axis=-1)                      # (B, E)


# ----------------------------------------------------------------------------
# Kernel 2: UMNN MonotonicNN over a tile of TR quantile rows (grid = row tiles)
# ----------------------------------------------------------------------------
def _monotone_kernel(tau_ref, h_ref, xs_ref, rep_ref, wredt_ref,
                     iw1x_ref, iw1h_ref, iw2_ref, iw3_ref,
                     sw1_ref, sw2_ref, sw3_ref,
                     bias4_ref, bsmall_ref, out_ref):
    f32 = jnp.float32
    tau = tau_ref[...]            # (TR, 1)     sorted taus for this tile
    h = h_ref[...]                # (TR, E)     conditioning embedding rows
    xs = xs_ref[...]              # (TR*S, 1)   quadrature abscissae, row = j*S + k
    rep = rep_ref[...]            # (TR*S, TR)  0/1 row-expansion matrix (rows sum to 1)
    wredt = wredt_ref[...]        # (TR, TR*S)  block-diagonal Clenshaw-Curtis weights

    ib1 = bias4_ref[0:1, :]
    ib2 = bias4_ref[1:2, :]
    sb1 = bias4_ref[2:3, :]
    sb2 = bias4_ref[3:4, :]
    ib3 = bsmall_ref[0:1, 0:1]    # (1, 1)
    sb3 = bsmall_ref[0:1, 1:3]    # (1, 2)

    # --- MonotonicNN scaling / offset net: Linear->ReLU->Linear->ReLU->Linear(E,2)
    s = jnp.maximum(jnp.dot(h, sw1_ref[...], preferred_element_type=f32) + sb1, 0.0)
    s = jnp.maximum(jnp.dot(s, sw2_ref[...], preferred_element_type=f32) + sb2, 0.0)
    o = jnp.dot(s, sw3_ref[...], preferred_element_type=f32) + sb3        # (TR, 2)
    offset = o[:, 0:1]
    scaling = jnp.exp(o[:, 1:2])

    # --- IntegrandNN on the flat (TR*S, E) quadrature slab, 2-D end to end.
    # Layer 1 is split into the tau column and the h part; the h part is computed on
    # TR rows only and expanded to TR*S rows with a 0/1 MXU matmul (the bias ib1
    # rides along for free because each rep row sums to 1).
    hpart = jnp.dot(h, iw1h_ref[...], preferred_element_type=f32) + ib1             # (TR, E)
    pre1 = xs * iw1x_ref[...] + jnp.dot(rep, hpart, preferred_element_type=f32)     # (TR*S, E)
    a = jnp.maximum(pre1, 0.0)
    a = jnp.maximum(jnp.dot(a, iw2_ref[...], preferred_element_type=f32) + ib2, 0.0)
    g = jnp.dot(a, iw3_ref[...], preferred_element_type=f32) + ib3                  # (TR*S, 1)
    g = jnp.where(g > 0.0, g, jnp.exp(jnp.minimum(g, 0.0)) - 1.0) + 1.0             # ELU + 1

    # --- Clenshaw-Curtis weighted sum per row, as an MXU matmul (no (TR,S) relayout)
    zsum = jnp.dot(wredt, g, preferred_element_type=f32)                             # (TR, 1)
    integral = zsum * (tau * 0.5)

    out_ref[...] = scaling * integral + offset                                       # (TR, 1)


# ----------------------------------------------------------------------------
# Wrapper
# ----------------------------------------------------------------------------
_EMBED_PARAMS = ("qw1", "qb1", "qw2", "qb2",
                 "kw1", "kb1", "kw2", "kb2", "kw3", "kb3",
                 "vw1", "vb1", "vw2", "vb2", "vw3", "vb3")


def _pick_row_tile(R, S, E):
    """Row-tile size for the monotone kernel's parallel grid over the B*N rows."""
    # Keep the (TR*S, E) f32 activation slab around ~4 MiB so live copies plus
    # double-buffered inputs fit every generation's VMEM (incl. v7x 64 MiB).
    budget = max(8, (4 << 20) // (E * 4 * S))
    divs = [d for d in range(8, R + 1, 8) if R % d == 0]
    if not divs:
        return R
    two_plus = [d for d in divs if d <= budget and 2 * d <= R]
    if two_plus:                 # >= 2 tiles lets the "parallel" axis use both v7x cores
        return max(two_plus)
    fit = [d for d in divs if d <= budget]
    return max(fit) if fit else min(divs)


def alpha_monotonic_iqn_forward(params, obs, action, taus, alpha, *, nb_steps=50):
    f32 = jnp.float32
    obs = obs.astype(f32)
    action = action.astype(f32)
    taus = taus.astype(f32)
    alpha = alpha.astype(f32)

    B = obs.shape[0]
    E = params["qw2"].shape[-1]
    N = taus.shape[-1]
    x = jnp.concatenate([obs, action], axis=-1)

    # ---- AlphaAttention embedding ----
    z = pl.pallas_call(
        _embed_kernel,
        out_shape=jax.ShapeDtypeStruct((B, E), f32),
    )(x, alpha, *[params[k] for k in _EMBED_PARAMS])

    # ---- glue: exactly the torch no_grad reshaping / pairing ----
    taus_sorted = jnp.sort(taus, axis=-1)
    taus_flat = taus_sorted.reshape(-1, 1)                       # (R, 1), row = b*N + n
    R = taus_flat.shape[0]
    required = R // B
    z_rep = jnp.broadcast_to(z[None], (required, B, E)).reshape(R, E)   # row r -> z[r % B]

    # ---- hoisted, tile-invariant quadrature constants & helper matrices ----
    cc_w, steps = _compute_cc_weights(nb_steps)                  # numpy (S,1), (S,1)
    S = nb_steps + 1
    half_steps = (steps.reshape(1, -1) + 1.0) * 0.5              # (1, S)
    xs_flat = (taus_flat * jnp.asarray(half_steps)).reshape(R * S, 1)   # row = r*S + k

    TR = _pick_row_tile(R, S, E)
    num_tiles = R // TR
    TRS = TR * S
    rep = jnp.asarray(np.kron(np.eye(TR, dtype=np.float32),
                              np.ones((S, 1), dtype=np.float32)))        # (TRS, TR)
    wredt = jnp.asarray(np.kron(np.eye(TR, dtype=np.float32),
                                cc_w.reshape(1, S)))                      # (TR, TRS)

    iw1x = params["iw1"][0:1, :]
    iw1h = params["iw1"][1:, :]
    bias4 = jnp.concatenate([params["ib1"], params["ib2"],
                             params["sb1"], params["sb2"]], axis=0)       # (4, E)
    bsmall = jnp.concatenate([params["ib3"], params["sb3"]], axis=1)      # (1, 3)

    row2 = lambda i: (i, 0)   # per-tile blocks
    inv2 = lambda i: (0, 0)   # grid-invariant blocks (fetched once)

    q_flat = pl.pallas_call(
        _monotone_kernel,
        out_shape=jax.ShapeDtypeStruct((R, 1), f32),
        grid_spec=pltpu.PrefetchScalarGridSpec(
            num_scalar_prefetch=0,
            grid=(num_tiles,),
            in_specs=[
                pl.BlockSpec((TR, 1), row2),        # sorted taus
                pl.BlockSpec((TR, E), row2),        # h (= expanded z)
                pl.BlockSpec((TRS, 1), row2),       # quadrature abscissae
                pl.BlockSpec((TRS, TR), inv2),      # row-expansion matrix
                pl.BlockSpec((TR, TRS), inv2),      # CC reduction matrix
                pl.BlockSpec((1, E), inv2),         # iw1 (tau column)
                pl.BlockSpec((E, E), inv2),         # iw1 (h part)
                pl.BlockSpec((E, E), inv2),         # iw2
                pl.BlockSpec((E, 1), inv2),         # iw3
                pl.BlockSpec((E, E), inv2),         # sw1
                pl.BlockSpec((E, E), inv2),         # sw2
                pl.BlockSpec((E, 2), inv2),         # sw3
                pl.BlockSpec((4, E), inv2),         # packed (1,E) biases
                pl.BlockSpec((1, 3), inv2),         # packed tiny biases
            ],
            out_specs=pl.BlockSpec((TR, 1), row2),
        ),
        compiler_params=pltpu.CompilerParams(
            dimension_semantics=("parallel",)),
    )(taus_flat, z_rep, xs_flat, rep, wredt,
      iw1x, iw1h, params["iw2"], params["iw3"],
      params["sw1"], params["sw2"], params["sw3"],
      bias4, bsmall)

    return q_flat.reshape(-1, N)


# ----------------------------------------------------------------------------
# Deterministic parameter init (torch nn.Linear default; weights as (fan_in, fan_out))
# ----------------------------------------------------------------------------
def init_params(key, in_dim, E):
    shapes = [
        ("qw1", "qb1", 1, 64), ("qw2", "qb2", 64, E),                               # AlphaEmbeddingNet
        ("kw1", "kb1", in_dim, 64), ("kw2", "kb2", 64, 64), ("kw3", "kb3", 64, E),  # key MLP
        ("vw1", "vb1", in_dim, 64), ("vw2", "vb2", 64, 64), ("vw3", "vb3", 64, E),  # value MLP
        ("sw1", "sb1", E, E), ("sw2", "sb2", E, E), ("sw3", "sb3", E, 2),           # MonotonicNN scaling net
        ("iw1", "ib1", E + 1, E), ("iw2", "ib2", E, E), ("iw3", "ib3", E, 1),       # IntegrandNN
    ]
    keys = jax.random.split(key, 2 * len(shapes))
    p = {}
    for idx, (wn, bn, fi, fo) in enumerate(shapes):
        bound = 1.0 / math.sqrt(fi)
        p[wn] = jax.random.uniform(keys[2 * idx], (fi, fo), jnp.float32, -bound, bound)
        p[bn] = jax.random.uniform(keys[2 * idx + 1], (1, fo), jnp.float32, -bound, bound)
    return p


# ----------------------------------------------------------------------------
# Pure-JAX reference (mirrors the torch forward)
# ----------------------------------------------------------------------------
def reference(params, obs, action, taus, alpha, nb_steps=50):
    f32 = jnp.float32
    x = jnp.concatenate([obs, action], axis=-1).astype(f32)
    B = x.shape[0]
    E = params["qw2"].shape[-1]
    N = taus.shape[-1]

    def mlp(inp, pre):
        h = jax.nn.relu(inp @ params[pre + "w1"] + params[pre + "b1"])
        h = jax.nn.relu(h @ params[pre + "w2"] + params[pre + "b2"])
        return h @ params[pre + "w3"] + params[pre + "b3"]

    q = jax.nn.relu(alpha @ params["qw1"] + params["qb1"]) @ params["qw2"] + params["qb2"]
    k = mlp(x, "k")
    v = mlp(x, "v")
    s = (q[:, :, None] * k[:, None, :]) / math.sqrt(E)
    p = jax.nn.softmax(s, axis=-1)
    z = jnp.einsum("bij,bj->bi", p, v)

    taus_s = jnp.sort(taus.astype(f32), axis=-1)
    t = taus_s.reshape(-1, 1)
    R = t.shape[0]
    required = R // B
    h = jnp.broadcast_to(z[None], (required, B, E)).reshape(R, E)

    out = jax.nn.relu(h @ params["sw1"] + params["sb1"])
    out = jax.nn.relu(out @ params["sw2"] + params["sb2"])
    out = out @ params["sw3"] + params["sb3"]
    offset = out[:, 0:1]
    scaling = jnp.exp(out[:, 1:2])

    cc_w, steps = _compute_cc_weights(nb_steps)
    S = nb_steps + 1
    xg = t * jnp.asarray((steps.reshape(1, -1) + 1.0) * 0.5)     # (R, S)
    xf = xg.reshape(-1, 1)
    hf = jnp.repeat(h, S, axis=0)
    inp = jnp.concatenate([xf, hf], axis=1)
    g = jax.nn.relu(inp @ params["iw1"] + params["ib1"])
    g = jax.nn.relu(g @ params["iw2"] + params["ib2"])
    g = g @ params["iw3"] + params["ib3"]
    g = jnp.where(g > 0.0, g, jnp.exp(jnp.minimum(g, 0.0)) - 1.0) + 1.0
    z_est = g.reshape(R, S) @ jnp.asarray(cc_w)                   # (R, 1)
    integral = z_est * t * 0.5
    quantiles = scaling * integral + offset
    return quantiles.reshape(-1, N)


if __name__ == "__main__":
    key = jax.random.PRNGKey(0)
    B, feature_dim, action_dim, N = 4, 16, 4, 8
    net_arch = (64, 64)
    E = net_arch[-1]

    kp, ko, ka, kt, kl = jax.random.split(key, 5)
    params = init_params(kp, feature_dim + action_dim, E)
    obs = jax.random.normal(ko, (B, feature_dim), jnp.float32)
    action = jax.random.normal(ka, (B, action_dim), jnp.float32)
    taus = jax.random.uniform(kt, (B, N), jnp.float32)
    alpha = jax.random.uniform(kl, (B, 1), jnp.float32)

    out = alpha_monotonic_iqn_forward(params, obs, action, taus, alpha)
    out = jax.block_until_ready(out)
    assert out.shape == (B, N), out.shape

    ref = reference(params, obs, action, taus, alpha)
    np.testing.assert_allclose(np.asarray(out), np.asarray(ref), atol=5e-3, rtol=5e-3)
    print("KERNEL_OK")
</pallas_src>

<mosaic_0001>
module attributes {stable_mosaic.version = 11 : i64} {
  func.func @_embed_kernel(%arg0: memref<4x20xf32, #tpu.memory_space<vmem>>, %arg1: memref<4x1xf32, #tpu.memory_space<vmem>>, %arg2: memref<1x64xf32, #tpu.memory_space<vmem>>, %arg3: memref<1x64xf32, #tpu.memory_space<vmem>>, %arg4: memref<64x64xf32, #tpu.memory_space<vmem>>, %arg5: memref<1x64xf32, #tpu.memory_space<vmem>>, %arg6: memref<20x64xf32, #tpu.memory_space<vmem>>, %arg7: memref<1x64xf32, #tpu.memory_space<vmem>>, %arg8: memref<64x64xf32, #tpu.memory_space<vmem>>, %arg9: memref<1x64xf32, #tpu.memory_space<vmem>>, %arg10: memref<64x64xf32, #tpu.memory_space<vmem>>, %arg11: memref<1x64xf32, #tpu.memory_space<vmem>>, %arg12: memref<20x64xf32, #tpu.memory_space<vmem>>, %arg13: memref<1x64xf32, #tpu.memory_space<vmem>>, %arg14: memref<64x64xf32, #tpu.memory_space<vmem>>, %arg15: memref<1x64xf32, #tpu.memory_space<vmem>>, %arg16: memref<64x64xf32, #tpu.memory_space<vmem>>, %arg17: memref<1x64xf32, #tpu.memory_space<vmem>>, %arg18: memref<4x64xf32, #tpu.memory_space<vmem>>) attributes {dimension_semantics = [], scalar_prefetch = 0 : i64, scratch_operands = 0 : i64, tpu.core_type = #tpu.core_type<tc>} {
    %c0 = arith.constant 0 : index
    %c0_0 = arith.constant 0 : index
    %0 = vector.load %arg0[%c0, %c0_0] : memref<4x20xf32, #tpu.memory_space<vmem>>, vector<4x20xf32>
    %c0_1 = arith.constant 0 : index
    %c0_2 = arith.constant 0 : index
    %1 = vector.load %arg1[%c0_1, %c0_2] : memref<4x1xf32, #tpu.memory_space<vmem>>, vector<4x1xf32>
    %c0_3 = arith.constant 0 : index
    %c0_4 = arith.constant 0 : index
    %2 = vector.load %arg2[%c0_3, %c0_4] : memref<1x64xf32, #tpu.memory_space<vmem>>, vector<1x64xf32>
    %3 = vector.broadcast %1 : vector<4x1xf32> to vector<4x64xf32>
    %4 = vector.broadcast %2 : vector<1x64xf32> to vector<4x64xf32>
    %5 = arith.mulf %3, %4 : vector<4x64xf32>
    %c0_5 = arith.constant 0 : index
    %c0_6 = arith.constant 0 : index
    %6 = vector.load %arg3[%c0_5, %c0_6] : memref<1x64xf32, #tpu.memory_space<vmem>>, vector<1x64xf32>
    %7 = vector.broadcast %6 : vector<1x64xf32> to vector<4x64xf32>
    %8 = arith.addf %5, %7 : vector<4x64xf32>
    %cst = arith.constant 0.000000e+00 : f32
    %9 = vector.broadcast %cst : f32 to vector<4x64xf32>
    %10 = arith.maximumf %8, %9 : vector<4x64xf32>
    %c0_7 = arith.constant 0 : index
    %c0_8 = arith.constant 0 : index
    %11 = vector.load %arg4[%c0_7, %c0_8] : memref<64x64xf32, #tpu.memory_space<vmem>>, vector<64x64xf32>
    %cst_9 = arith.constant dense<0.000000e+00> : vector<4x64xf32>
    %12 = tpu.matmul %10, %11, %cst_9 {dimension_numbers = #tpu.dot_dimension_numbers<[1], [0], [0], [1], [0, 0, 1, 1], [], []>} : vector<4x64xf32>, vector<64x64xf32>, vector<4x64xf32> -> vector<4x64xf32>
    %c0_10 = arith.constant 0 : index
    %c0_11 = arith.constant 0 : index
    %13 = vector.load %arg5[%c0_10, %c0_11] : memref<1x64xf32, #tpu.memory_space<vmem>>, vector<1x64xf32>
    %14 = vector.broadcast %13 : vector<1x64xf32> to vector<4x64xf32>
    %15 = arith.addf %12, %14 : vector<4x64xf32>
    %c0_12 = arith.constant 0 : index
    %c0_13 = arith.constant 0 : index
    %16 = vector.load %arg6[%c0_12, %c0_13] : memref<20x64xf32, #tpu.memory_space<vmem>>, vector<20x64xf32>
    %cst_14 = arith.constant dense<0.000000e+00> : vector<4x64xf32>
    %17 = tpu.matmul %0, %16, %cst_14 {dimension_numbers = #tpu.dot_dimension_numbers<[1], [0], [0], [1], [0, 0, 1, 1], [], []>} : vector<4x20xf32>, vector<20x64xf32>, vector<4x64xf32> -> vector<4x64xf32>
    %c0_15 = arith.constant 0 : index
    %c0_16 = arith.constant 0 : index
    %18 = vector.load %arg7[%c0_15, %c0_16] : memref<1x64xf32, #tpu.memory_space<vmem>>, vector<1x64xf32>
    %19 = vector.broadcast %18 : vector<1x64xf32> to vector<4x64xf32>
    %20 = arith.addf %17, %19 : vector<4x64xf32>
    %cst_17 = arith.constant 0.000000e+00 : f32
    %21 = vector.broadcast %cst_17 : f32 to vector<4x64xf32>
    %22 = arith.maximumf %20, %21 : vector<4x64xf32>
    %c0_18 = arith.constant 0 : index
    %c0_19 = arith.constant 0 : index
    %23 = vector.load %arg8[%c0_18, %c0_19] : memref<64x64xf32, #tpu.memory_space<vmem>>, vector<64x64xf32>
    %cst_20 = arith.constant dense<0.000000e+00> : vector<4x64xf32>
    %24 = tpu.matmul %22, %23, %cst_20 {dimension_numbers = #tpu.dot_dimension_numbers<[1], [0], [0], [1], [0, 0, 1, 1], [], []>} : vector<4x64xf32>, vector<64x64xf32>, vector<4x64xf32> -> vector<4x64xf32>
    %c0_21 = arith.constant 0 : index
    %c0_22 = arith.constant 0 : index
    %25 = vector.load %arg9[%c0_21, %c0_22] : memref<1x64xf32, #tpu.memory_space<vmem>>, vector<1x64xf32>
    %26 = vector.broadcast %25 : vector<1x64xf32> to vector<4x64xf32>
    %27 = arith.addf %24, %26 : vector<4x64xf32>
    %cst_23 = arith.constant 0.000000e+00 : f32
    %28 = vector.broadcast %cst_23 : f32 to vector<4x64xf32>
    %29 = arith.maximumf %27, %28 : vector<4x64xf32>
    %c0_24 = arith.constant 0 : index
    %c0_25 = arith.constant 0 : index
    %30 = vector.load %arg10[%c0_24, %c0_25] : memref<64x64xf32, #tpu.memory_space<vmem>>, vector<64x64xf32>
    %cst_26 = arith.constant dense<0.000000e+00> : vector<4x64xf32>
    %31 = tpu.matmul %29, %30, %cst_26 {dimension_numbers = #tpu.dot_dimension_numbers<[1], [0], [0], [1], [0, 0, 1, 1], [], []>} : vector<4x64xf32>, vector<64x64xf32>, vector<4x64xf32> -> vector<4x64xf32>
    %c0_27 = arith.constant 0 : index
    %c0_28 = arith.constant 0 : index
    %32 = vector.load %arg11[%c0_27, %c0_28] : memref<1x64xf32, #tpu.memory_space<vmem>>, vector<1x64xf32>
    %33 = vector.broadcast %32 : vector<1x64xf32> to vector<4x64xf32>
    %34 = arith.addf %31, %33 : vector<4x64xf32>
    %c0_29 = arith.constant 0 : index
    %c0_30 = arith.constant 0 : index
    %35 = vector.load %arg12[%c0_29, %c0_30] : memref<20x64xf32, #tpu.memory_space<vmem>>, vector<20x64xf32>
    %cst_31 = arith.constant dense<0.000000e+00> : vector<4x64xf32>
    %36 = tpu.matmul %0, %35, %cst_31 {dimension_numbers = #tpu.dot_dimension_numbers<[1], [0], [0], [1], [0, 0, 1, 1], [], []>} : vector<4x20xf32>, vector<20x64xf32>, vector<4x64xf32> -> vector<4x64xf32>
    %c0_32 = arith.constant 0 : index
    %c0_33 = arith.constant 0 : index
    %37 = vector.load %arg13[%c0_32, %c0_33] : memref<1x64xf32, #tpu.memory_space<vmem>>, vector<1x64xf32>
    %38 = vector.broadcast %37 : vector<1x64xf32> to vector<4x64xf32>
    %39 = arith.addf %36, %38 : vector<4x64xf32>
    %cst_34 = arith.constant 0.000000e+00 : f32
    %40 = vector.broadcast %cst_34 : f32 to vector<4x64xf32>
    %41 = arith.maximumf %39, %40 : vector<4x64xf32>
    %c0_35 = arith.constant 0 : index
    %c0_36 = arith.constant 0 : index
    %42 = vector.load %arg14[%c0_35, %c0_36] : memref<64x64xf32, #tpu.memory_space<vmem>>, vector<64x64xf32>
    %cst_37 = arith.constant dense<0.000000e+00> : vector<4x64xf32>
    %43 = tpu.matmul %41, %42, %cst_37 {dimension_numbers = #tpu.dot_dimension_numbers<[1], [0], [0], [1], [0, 0, 1, 1], [], []>} : vector<4x64xf32>, vector<64x64xf32>, vector<4x64xf32> -> vector<4x64xf32>
    %c0_38 = arith.constant 0 : index
    %c0_39 = arith.constant 0 : index
    %44 = vector.load %arg15[%c0_38, %c0_39] : memref<1x64xf32, #tpu.memory_space<vmem>>, vector<1x64xf32>
    %45 = vector.broadcast %44 : vector<1x64xf32> to vector<4x64xf32>
    %46 = arith.addf %43, %45 : vector<4x64xf32>
    %cst_40 = arith.constant 0.000000e+00 : f32
    %47 = vector.broadcast %cst_40 : f32 to vector<4x64xf32>
    %48 = arith.maximumf %46, %47 : vector<4x64xf32>
    %c0_41 = arith.constant 0 : index
    %c0_42 = arith.constant 0 : index
    %49 = vector.load %arg16[%c0_41, %c0_42] : memref<64x64xf32, #tpu.memory_space<vmem>>, vector<64x64xf32>
    %cst_43 = arith.constant dense<0.000000e+00> : vector<4x64xf32>
    %50 = tpu.matmul %48, %49, %cst_43 {dimension_numbers = #tpu.dot_dimension_numbers<[1], [0], [0], [1], [0, 0, 1, 1], [], []>} : vector<4x64xf32>, vector<64x64xf32>, vector<4x64xf32> -> vector<4x64xf32>
    %c0_44 = arith.constant 0 : index
    %c0_45 = arith.constant 0 : index
    %51 = vector.load %arg17[%c0_44, %c0_45] : memref<1x64xf32, #tpu.memory_space<vmem>>, vector<1x64xf32>
    %52 = vector.broadcast %51 : vector<1x64xf32> to vector<4x64xf32>
    %53 = arith.addf %50, %52 : vector<4x64xf32>
    %54 = vector.shape_cast %15 : vector<4x64xf32> to vector<4x64x1xf32>
    %55 = vector.shape_cast %34 : vector<4x64xf32> to vector<4x1x64xf32>
    %cst_46 = arith.constant 1.250000e-01 : f32
    %56 = vector.broadcast %cst_46 : f32 to vector<4x1x64xf32>
    %57 = arith.mulf %55, %56 : vector<4x1x64xf32>
    %58 = vector.broadcast %54 : vector<4x64x1xf32> to vector<4x64x64xf32>
    %59 = vector.broadcast %57 : vector<4x1x64xf32> to vector<4x64x64xf32>
    %60 = arith.mulf %58, %59 : vector<4x64x64xf32>
    %cst_47 = arith.constant dense<0xFF800000> : vector<4x64xf32>
    %61 = vector.multi_reduction <maximumf>, %60, %cst_47 [2] : vector<4x64x64xf32> to vector<4x64xf32>
    %62 = vector.shape_cast %61 : vector<4x64xf32> to vector<4x64x1xf32>
    %63 = vector.broadcast %62 : vector<4x64x1xf32> to vector<4x64x64xf32>
    %64 = arith.subf %60, %63 : vector<4x64x64xf32>
    %65 = math.exp %64 : vector<4x64x64xf32>
    %cst_48 = arith.constant dense<0.000000e+00> : vector<4x64xf32>
    %66 = vector.multi_reduction <add>, %65, %cst_48 [2] : vector<4x64x64xf32> to vector<4x64xf32>
    %67 = vector.shape_cast %66 : vector<4x64xf32> to vector<4x64x1xf32>
    %68 = vector.broadcast %67 : vector<4x64x1xf32> to vector<4x64x64xf32>
    %69 = arith.divf %65, %68 : vector<4x64x64xf32>
    %70 = vector.shape_cast %53 : vector<4x64xf32> to vector<4x1x64xf32>
    %71 = vector.broadcast %70 : vector<4x1x64xf32> to vector<4x64x64xf32>
    %72 = arith.mulf %69, %71 : vector<4x64x64xf32>
    %cst_49 = arith.constant dense<0.000000e+00> : vector<4x64xf32>
    %73 = vector.multi_reduction <add>, %72, %cst_49 [2] : vector<4x64x64xf32> to vector<4x64xf32>
    %c0_50 = arith.constant 0 : index
    %c0_51 = arith.constant 0 : index
    %74 = vector.load %arg18[%c0_50, %c0_51] : memref<4x64xf32, #tpu.memory_space<vmem>>, vector<4x64xf32>
    tpu.vector_store %arg18[%c0_50, %c0_51], %73 {strides = array<i32>} : memref<4x64xf32, #tpu.memory_space<vmem>>, vector<4x64xf32>,
    return
  }
}

</mosaic_0001>

<llo_original>
// kernel: tpu_custom_call.1
$region0: #{tpu_custom_call.1}
  #allocation0 [shape = 'u32[]', space=smem, size = 0x4, offset = 0x4, fixed_abs, tag = 'smem constant byte address 0x4 - core index']
  #allocation1 [shape = 'u32[144,128]{1,0:T(1,128)}', space=vmem, size = 0x12000, scoped, tag = 'internal scratch']
  %s0 = inlined_call_operand.hbm [shape: f32[4,20], index: 0, kind: input, shape index: {}]
  %s1 = inlined_call_operand.vmem [shape: f32[4,1], index: 1, kind: input, shape index: {}]
  %s2 = inlined_call_operand.vmem [shape: f32[1,64], index: 2, kind: input, shape index: {}]
  %s3 = inlined_call_operand.hbm [shape: f32[1,64], index: 3, kind: input, shape index: {}]
  %s4 = inlined_call_operand.hbm [shape: f32[64,64], index: 4, kind: input, shape index: {}]
  %s5 = inlined_call_operand.hbm [shape: f32[1,64], index: 5, kind: input, shape index: {}]
  %s6 = inlined_call_operand.hbm [shape: f32[20,64], index: 6, kind: input, shape index: {}]
  %s7 = inlined_call_operand.hbm [shape: f32[1,64], index: 7, kind: input, shape index: {}]
  %s8 = inlined_call_operand.hbm [shape: f32[64,64], index: 8, kind: input, shape index: {}]
  %s9 = inlined_call_operand.hbm [shape: f32[1,64], index: 9, kind: input, shape index: {}]
  %s10 = inlined_call_operand.hbm [shape: f32[64,64], index: 10, kind: input, shape index: {}]
  %s11 = inlined_call_operand.hbm [shape: f32[1,64], index: 11, kind: input, shape index: {}]
  %s12 = inlined_call_operand.hbm [shape: f32[20,64], index: 12, kind: input, shape index: {}]
  %s13 = inlined_call_operand.hbm [shape: f32[1,64], index: 13, kind: input, shape index: {}]
  %s14 = inlined_call_operand.hbm [shape: f32[64,64], index: 14, kind: input, shape index: {}]
  %s15 = inlined_call_operand.hbm [shape: f32[1,64], index: 15, kind: input, shape index: {}]
  %s16 = inlined_call_operand.vmem [shape: f32[64,64], index: 16, kind: input, shape index: {}]
  %s17 = inlined_call_operand.vmem [shape: f32[1,64], index: 17, kind: input, shape index: {}]
  %s18 = inlined_call_operand.hbm [shape: f32[4,64], index: 18, kind: output, shape index: {}]
  %s19 = sld [smem:[#allocation0]]
  $region138: #{tpu_custom_call.1} parent=0
    _
  %s21 = ssub.s32 1, %s19
  %s22 = scalar_select 0, %s21, %s19
  $region1: #{tpu_custom_call.1} parent=0
    #allocation2 [shape = 'u8[2048]{0}', space=vmem, size = 0x800, scoped, tag = 'input window, operand 0, single buffered']
    #allocation3 [shape = 's32[1]{0}', space=sflag, size = 0x4, scoped, tag = 'scoped memory for tpu_custom_call.1']
    #allocation4 [shape = 's32[1]{0}', space=sflag, size = 0x4, scoped, tag = 'scoped memory for tpu_custom_call.1']
    #allocation5 [shape = 'u8[512]{0}', space=vmem, size = 0x400, scoped, tag = 'input window, operand 3, single buffered']
    #allocation6 [shape = 's32[1]{0}', space=sflag, size = 0x4, scoped, tag = 'scoped memory for tpu_custom_call.1']
    #allocation7 [shape = 'u8[32768]{0}', space=vmem, size = 0x8000, scoped, tag = 'input window, operand 4, single buffered']
    #allocation8 [shape = 'u8[512]{0}', space=vmem, size = 0x400, scoped, tag = 'input window, operand 5, single buffered']
    #allocation9 [shape = 's32[1]{0}', space=sflag, size = 0x4, scoped, tag = 'scoped memory for tpu_custom_call.1']
    #allocation10 [shape = 'u8[12288]{0}', space=vmem, size = 0x3000, scoped, tag = 'input window, operand 6, single buffered']
    #allocation11 [shape = 'u8[512]{0}', space=vmem, size = 0x400, scoped, tag = 'input window, operand 7, single buffered']
    #allocation12 [shape = 's32[1]{0}', space=sflag, size = 0x4, scoped, tag = 'scoped memory for tpu_custom_call.1']
    #allocation13 [shape = 'u8[32768]{0}', space=vmem, size = 0x8000, scoped, tag = 'input window, operand 8, single buffered']
    #allocation14 [shape = 'u8[512]{0}', space=vmem, size = 0x400, scoped, tag = 'input window, operand 9, single buffered']
    #allocation15 [shape = 's32[1]{0}', space=sflag, size = 0x4, scoped, tag = 'scoped memory for tpu_custom_call.1']
    #allocation16 [shape = 'u8[32768]{0}', space=vmem, size = 0x8000, scoped, tag = 'input window, operand 10, single buffered']
    #allocation17 [shape = 'u8[512]{0}', space=vmem, size = 0x400, scoped, tag = 'input window, operand 11, single buffered']
    #allocation18 [shape = 's32[1]{0}', space=sflag, size = 0x4, scoped, tag = 'scoped memory for tpu_custom_call.1']
    #allocation19 [shape = 'u8[12288]{0}', space=vmem, size = 0x3000, scoped, tag = 'input window, operand 12, single buffered']
    #allocation20 [shape = 'u8[512]{0}', space=vmem, size = 0x400, scoped, tag = 'input window, operand 13, single buffered']
    #allocation21 [shape = 's32[1]{0}', space=sflag, size = 0x4, scoped, tag = 'scoped memory for tpu_custom_call.1']
    #allocation22 [shape = 'u8[32768]{0}', space=vmem, size = 0x8000, scoped, tag = 'input window, operand 14, single buffered']
    #allocation23 [shape = 'u8[512]{0}', space=vmem, size = 0x400, scoped, tag = 'input window, operand 15, single buffered']
    #allocation24 [shape = 's32[1]{0}', space=sflag, size = 0x4, scoped, tag = 'scoped memory for tpu_custom_call.1']
    #allocation25 [shape = 'u8[2048]{0}', space=vmem, size = 0x800, scoped, tag = 'output window, operand 0, single buffered']
    %23 = vsyncpa [#allocation3], 0
    %24 = vsyncpa [#allocation6], 0
    %25 = vsyncpa [#allocation9], 0
    %26 = vsyncpa [#allocation12], 0
    %27 = vsyncpa [#allocation15], 0
    %28 = vsyncpa [#allocation18], 0
    %29 = vsyncpa [#allocation21], 0
    %30 = vsyncpa [#allocation24], 0
    %31 = vsyncpa [#allocation4], 0
    // Predicated region
    $region2: #{tpu_custom_call.1} parent=1 // pred_check
      _
    $region3: #{tpu_custom_call.1} parent=1 // pred_check_branch
      %33 = sbr.rel (0) target = $region5
    $region4: #{tpu_custom_call.1} parent=1 // pred_region
      %s35 = ssub.s32 64, 64
      %36 = vsyncadd [#allocation3], %s35
      %s38 = sshll.u32 [#allocation2], 4
      %s39 = int_to_ptr.vmem [resolvable:$true] %s38
      %41 = dma.hbm_to_vmem [thread:$0]  %s0, 64, %s39, [#allocation3]
    $region5: #{tpu_custom_call.1} parent=1 // pred_fallthru
      _
    // Predicated region
    $region6: #{tpu_custom_call.1} parent=1 // pred_check
      _
    $region7: #{tpu_custom_call.1} parent=1 // pred_check_branch
      %43 = sbr.rel (0) target = $region9
    $region8: #{tpu_custom_call.1} parent=1 // pred_region
      _
    $region9: #{tpu_custom_call.1} parent=1 // pred_fallthru
      _
    // Predicated region
    $region10: #{tpu_custom_call.1} parent=1 // pred_check
      _
    $region11: #{tpu_custom_call.1} parent=1 // pred_check_branch
      %45 = sbr.rel (0) target = $region13
    $region12: #{tpu_custom_call.1} parent=1 // pred_region
      _
    $region13: #{tpu_custom_call.1} parent=1 // pred_fallthru
      _
    // Predicated region
    $region14: #{tpu_custom_call.1} parent=1 // pred_check
      _
    $region15: #{tpu_custom_call.1} parent=1 // pred_check_branch
      %47 = sbr.rel (0) target = $region17
    $region16: #{tpu_custom_call.1} parent=1 // pred_region
      %s49 = ssub.s32 16, 16
      %50 = vsyncadd [#allocation6], %s49
      %s52 = sshll.u32 [#allocation5], 4
      %s53 = int_to_ptr.vmem [resolvable:$true] %s52
      %55 = dma.hbm_to_vmem [thread:$0]  %s3, 16, %s53, [#allocation6]
    $region17: #{tpu_custom_call.1} parent=1 // pred_fallthru
      _
    // Predicated region
    $region18: #{tpu_custom_call.1} parent=1 // pred_check
      _
    $region19: #{tpu_custom_call.1} parent=1 // pred_check_branch
      %57 = sbr.rel (0) target = $region21
    $region20: #{tpu_custom_call.1} parent=1 // pred_region
      %s59 = ssub.s32 1024, 1024
      %60 = vsyncadd [#allocation6], %s59
      %s61 = sshll.u32 [#allocation7], 4
      %s62 = int_to_ptr.vmem [resolvable:$true] %s61
      %67 = dma.hbm_to_vmem [thread:$0]  %s4, 1024, %s62, [#allocation6], 128, 128, 8
    $region21: #{tpu_custom_call.1} parent=1 // pred_fallthru
      _
    // Predicated region
    $region22: #{tpu_custom_call.1} parent=1 // pred_check
      _
    $region23: #{tpu_custom_call.1} parent=1 // pred_check_branch
      %69 = sbr.rel (0) target = $region25
    $region24: #{tpu_custom_call.1} parent=1 // pred_region
      %s71 = ssub.s32 16, 16
      %72 = vsyncadd [#allocation9], %s71
      %s74 = sshll.u32 [#allocation8], 4
      %s75 = int_to_ptr.vmem [resolvable:$true] %s74
      %77 = dma.hbm_to_vmem [thread:$0]  %s5, 16, %s75, [#allocation9]
    $region25: #{tpu_custom_call.1} parent=1 // pred_fallthru
      _
    // Predicated region
    $region26: #{tpu_custom_call.1} parent=1 // pred_check
      _
    $region27: #{tpu_custom_call.1} parent=1 // pred_check_branch
      %79 = sbr.rel (0) target = $region29
    $region28: #{tpu_custom_call.1} parent=1 // pred_region
      %s81 = ssub.s32 384, 384
      %82 = vsyncadd [#allocation9], %s81
      %s83 = sshll.u32 [#allocation10], 4
      %s84 = int_to_ptr.vmem [resolvable:$true] %s83
      %89 = dma.hbm_to_vmem [thread:$0]  %s6, 384, %s84, [#allocation9], 128, 128, 8
    $region29: #{tpu_custom_call.1} parent=1 // pred_fallthru
      _
    // Predicated region
    $region30: #{tpu_custom_call.1} parent=1 // pred_check
      _
    $region31: #{tpu_custom_call.1} parent=1 // pred_check_branch
      %91 = sbr.rel (0) target = $region33
    $region32: #{tpu_custom_call.1} parent=1 // pred_region
      %s93 = ssub.s32 16, 16
      %94 = vsyncadd [#allocation12], %s93
      %s96 = sshll.u32 [#allocation11], 4
      %s97 = int_to_ptr.vmem [resolvable:$true] %s96
      %99 = dma.hbm_to_vmem [thread:$0]  %s7, 16, %s97, [#allocation12]
    $region33: #{tpu_custom_call.1} parent=1 // pred_fallthru
      _
    // Predicated region
    $region34: #{tpu_custom_call.1} parent=1 // pred_check
      _
    $region35: #{tpu_custom_call.1} parent=1 // pred_check_branch
      %101 = sbr.rel (0) target = $region37
    $region36: #{tpu_custom_call.1} parent=1 // pred_region
      %s103 = ssub.s32 1024, 1024
      %104 = vsyncadd [#allocation12], %s103
      %s105 = sshll.u32 [#allocation13], 4
      %s106 = int_to_ptr.vmem [resolvable:$true] %s105
      %111 = dma.hbm_to_vmem [thread:$0]  %s8, 1024, %s106, [#allocation12], 128, 128, 8
    $region37: #{tpu_custom_call.1} parent=1 // pred_fallthru
      _
    // Predicated region
    $region38: #{tpu_custom_call.1} parent=1 // pred_check
      _
    $region39: #{tpu_custom_call.1} parent=1 // pred_check_branch
      %113 = sbr.rel (0) target = $region41
    $region40: #{tpu_custom_call.1} parent=1 // pred_region
      %s115 = ssub.s32 16, 16
      %116 = vsyncadd [#allocation15], %s115
      %s118 = sshll.u32 [#allocation14], 4
      %s119 = int_to_ptr.vmem [resolvable:$true] %s118
      %121 = dma.hbm_to_vmem [thread:$0]  %s9, 16, %s119, [#allocation15]
    $region41: #{tpu_custom_call.1} parent=1 // pred_fallthru
      _
    // Predicated region
    $region42: #{tpu_custom_call.1} parent=1 // pred_check
      _
    $region43: #{tpu_custom_call.1} parent=1 // pred_check_branch
      %123 = sbr.rel (0) target = $region45
    $region44: #{tpu_custom_call.1} parent=1 // pred_region
      %s125 = ssub.s32 1024, 1024
      %126 = vsyncadd [#allocation15], %s125
      %s127 = sshll.u32 [#allocation16], 4
      %s128 = int_to_ptr.vmem [resolvable:$true] %s127
      %133 = dma.hbm_to_vmem [thread:$0]  %s10, 1024, %s128, [#allocation15], 128, 128, 8
    $region45: #{tpu_custom_call.1} parent=1 // pred_fallthru
      _
    // Predicated region
    $region46: #{tpu_custom_call.1} parent=1 // pred_check
      _
    $region47: #{tpu_custom_call.1} parent=1 // pred_check_branch
      %135 = sbr.rel (0) target = $region49
    $region48: #{tpu_custom_call.1} parent=1 // pred_region
      %s137 = ssub.s32 16, 16
      %138 = vsyncadd [#allocation18], %s137
      %s140 = sshll.u32 [#allocation17], 4
      %s141 = int_to_ptr.vmem [resolvable:$true] %s140
      %143 = dma.hbm_to_vmem [thread:$0]  %s11, 16, %s141, [#allocation18]
    $region49: #{tpu_custom_call.1} parent=1 // pred_fallthru
      _
    // Predicated region
    $region50: #{tpu_custom_call.1} parent=1 // pred_check
      _
    $region51: #{tpu_custom_call.1} parent=1 // pred_check_branch
      %145 = sbr.rel (0) target = $region53
    $region52: #{tpu_custom_call.1} parent=1 // pred_region
      %s147 = ssub.s32 384, 384
      %148 = vsyncadd [#allocation18], %s147
      %s149 = sshll.u32 [#allocation19], 4
      %s150 = int_to_ptr.vmem [resolvable:$true] %s149
      %155 = dma.hbm_to_vmem [thread:$0]  %s12, 384, %s150, [#allocation18], 128, 128, 8
    $region53: #{tpu_custom_call.1} parent=1 // pred_fallthru
      _
    // Predicated region
    $region54: #{tpu_custom_call.1} parent=1 // pred_check
      _
    $region55: #{tpu_custom_call.1} parent=1 // pred_check_branch
      %157 = sbr.rel (0) target = $region57
    $region56: #{tpu_custom_call.1} parent=1 // pred_region
      %s159 = ssub.s32 16, 16
      %160 = vsyncadd [#allocation21], %s159
      %s162 = sshll.u32 [#allocation20], 4
      %s163 = int_to_ptr.vmem [resolvable:$true] %s162
      %165 = dma.hbm_to_vmem [thread:$0]  %s13, 16, %s163, [#allocation21]
    $region57: #{tpu_custom_call.1} parent=1 // pred_fallthru
      _
    // Predicated region
    $region58: #{tpu_custom_call.1} parent=1 // pred_check
      _
    $region59: #{tpu_custom_call.1} parent=1 // pred_check_branch
      %167 = sbr.rel (0) target = $region61
    $region60: #{tpu_custom_call.1} parent=1 // pred_region
      %s169 = ssub.s32 1024, 1024
      %170 = vsyncadd [#allocation21], %s169
      %s171 = sshll.u32 [#allocation22], 4
      %s172 = int_to_ptr.vmem [resolvable:$true] %s171
      %177 = dma.hbm_to_vmem [thread:$0]  %s14, 1024, %s172, [#allocation21], 128, 128, 8
    $region61: #{tpu_custom_call.1} parent=1 // pred_fallthru
      _
    // Predicated region
    $region62: #{tpu_custom_call.1} parent=1 // pred_check
      _
    $region63: #{tpu_custom_call.1} parent=1 // pred_check_branch
      %179 = sbr.rel (0) target = $region65
    $region64: #{tpu_custom_call.1} parent=1 // pred_region
      %s181 = ssub.s32 16, 16
      %182 = vsyncadd [#allocation24], %s181
      %s184 = sshll.u32 [#allocation23], 4
      %s185 = int_to_ptr.vmem [resolvable:$true] %s184
      %187 = dma.hbm_to_vmem [thread:$0]  %s15, 16, %s185, [#allocation24]
    $region65: #{tpu_custom_call.1} parent=1 // pred_fallthru
      _
    // Predicated region
    $region66: #{tpu_custom_call.1} parent=1 // pred_check
      _
    $region67: #{tpu_custom_call.1} parent=1 // pred_check_branch
      %189 = sbr.rel (0) target = $region69
    $region68: #{tpu_custom_call.1} parent=1 // pred_region
      _
    $region69: #{tpu_custom_call.1} parent=1 // pred_fallthru
      _
    // Predicated region
    $region70: #{tpu_custom_call.1} parent=1 // pred_check
      _
    $region71: #{tpu_custom_call.1} parent=1 // pred_check_branch
      %191 = sbr.rel (0) target = $region73
    $region72: #{tpu_custom_call.1} parent=1 // pred_region
      _
    $region73: #{tpu_custom_call.1} parent=1 // pred_fallthru
      _
    // Predicated region
    $region74: #{tpu_custom_call.1} parent=1 // pred_check
      _
    $region75: #{tpu_custom_call.1} parent=1 // pred_check_branch
      %193 = sbr.rel (0) target = $region77
    $region76: #{tpu_custom_call.1} parent=1 // pred_region
      %194 = dma.done [#allocation3], 64
    $region77: #{tpu_custom_call.1} parent=1 // pred_fallthru
      _
    // Predicated region
    $region78: #{tpu_custom_call.1} parent=1 // pred_check
      _
    $region79: #{tpu_custom_call.1} parent=1 // pred_check_branch
      %196 = sbr.rel (0) target = $region81
    $region80: #{tpu_custom_call.1} parent=1 // pred_region
      %197 = dma.done [#allocation6], 16
    $region81: #{tpu_custom_call.1} parent=1 // pred_fallthru
      _
    // Predicated region
    $region82: #{tpu_custom_call.1} parent=1 // pred_check
      _
    $region83: #{tpu_custom_call.1} parent=1 // pred_check_branch
      %199 = sbr.rel (0) target = $region85
    $region84: #{tpu_custom_call.1} parent=1 // pred_region
      %200 = dma.done [#allocation6], 1024
    $region85: #{tpu_custom_call.1} parent=1 // pred_fallthru
      _
    // Predicated region
    $region86: #{tpu_custom_call.1} parent=1 // pred_check
      _
    $region87: #{tpu_custom_call.1} parent=1 // pred_check_branch
      %202 = sbr.rel (0) target = $region89
    $region88: #{tpu_custom_call.1} parent=1 // pred_region
      %203 = dma.done [#allocation9], 16
    $region89: #{tpu_custom_call.1} parent=1 // pred_fallthru
      _
    // Predicated region
    $region90: #{tpu_custom_call.1} parent=1 // pred_check
      _
    $region91: #{tpu_custom_call.1} parent=1 // pred_check_branch
      %205 = sbr.rel (0) target = $region93
    $region92: #{tpu_custom_call.1} parent=1 // pred_region
      %206 = dma.done [#allocation9], 384
    $region93: #{tpu_custom_call.1} parent=1 // pred_fallthru
      _
    // Predicated region
    $region94: #{tpu_custom_call.1} parent=1 // pred_check
      _
    $region95: #{tpu_custom_call.1} parent=1 // pred_check_branch
      %208 = sbr.rel (0) target = $region97
    $region96: #{tpu_custom_call.1} parent=1 // pred_region
      %209 = dma.done [#allocation12], 16
    $region97: #{tpu_custom_call.1} parent=1 // pred_fallthru
      _
    // Predicated region
    $region98: #{tpu_custom_call.1} parent=1 // pred_check
      _
    $region99: #{tpu_custom_call.1} parent=1 // pred_check_branch
      %211 = sbr.rel (0) target = $region101
    $region100: #{tpu_custom_call.1} parent=1 // pred_region
      %212 = dma.done [#allocation12], 1024
    $region101: #{tpu_custom_call.1} parent=1 // pred_fallthru
      _
    // Predicated region
    $region102: #{tpu_custom_call.1} parent=1 // pred_check
      _
    $region103: #{tpu_custom_call.1} parent=1 // pred_check_branch
      %214 = sbr.rel (0) target = $region105
    $region104: #{tpu_custom_call.1} parent=1 // pred_region
      %215 = dma.done [#allocation15], 16
    $region105: #{tpu_custom_call.1} parent=1 // pred_fallthru
      _
    // Predicated region
    $region106: #{tpu_custom_call.1} parent=1 // pred_check
      _
    $region107: #{tpu_custom_call.1} parent=1 // pred_check_branch
      %217 = sbr.rel (0) target = $region109
    $region108: #{tpu_custom_call.1} parent=1 // pred_region
      %218 = dma.done [#allocation15], 1024
    $region109: #{tpu_custom_call.1} parent=1 // pred_fallthru
      _
    // Predicated region
    $region110: #{tpu_custom_call.1} parent=1 // pred_check
      _
    $region111: #{tpu_custom_call.1} parent=1 // pred_check_branch
      %220 = sbr.rel (0) target = $region113
    $region112: #{tpu_custom_call.1} parent=1 // pred_region
      %221 = dma.done [#allocation18], 16
    $region113: #{tpu_custom_call.1} parent=1 // pred_fallthru
      _
    // Predicated region
    $region114: #{tpu_custom_call.1} parent=1 // pred_check
      _
    $region115: #{tpu_custom_call.1} parent=1 // pred_check_branch
      %223 = sbr.rel (0) target = $region117
    $region116: #{tpu_custom_call.1} parent=1 // pred_region
      %224 = dma.done [#allocation18], 384
    $region117: #{tpu_custom_call.1} parent=1 // pred_fallthru
      _
    // Predicated region
    $region118: #{tpu_custom_call.1} parent=1 // pred_check
      _
    $region119: #{tpu_custom_call.1} parent=1 // pred_check_branch
      %226 = sbr.rel (0) target = $region121
    $region120: #{tpu_custom_call.1} parent=1 // pred_region
      %227 = dma.done [#allocation21], 16
    $region121: #{tpu_custom_call.1} parent=1 // pred_fallthru
      _
    // Predicated region
    $region122: #{tpu_custom_call.1} parent=1 // pred_check
      _
    $region123: #{tpu_custom_call.1} parent=1 // pred_check_branch
      %229 = sbr.rel (0) target = $region125
    $region124: #{tpu_custom_call.1} parent=1 // pred_region
      %230 = dma.done [#allocation21], 1024
    $region125: #{tpu_custom_call.1} parent=1 // pred_fallthru
      _
    // Predicated region
    $region126: #{tpu_custom_call.1} parent=1 // pred_check
      _
    $region127: #{tpu_custom_call.1} parent=1 // pred_check_branch
      %232 = sbr.rel (0) target = $region129
    $region128: #{tpu_custom_call.1} parent=1 // pred_region
      %233 = dma.done [#allocation24], 16
    $region129: #{tpu_custom_call.1} parent=1 // pred_fallthru
      _
    %v234 = vld [vmem:[#allocation2] sm:$0xf]
    %v235 = vld [vmem:[%s1] sm:$0xf]
    %v236 = vld [vmem:[%s2] sm:$0x1]
    %238 = vset.pattern.permute.xlu0 0
    %239 = vperm.xlu0 %238, %v235
    %v240 = vpop.permute.xlu0 %239
    %v243 = vlaneseq
    %v244 = vshrl.u32 %v243, 7
    %v245 = vsub.s32 0, %v244
    %v246 = vrot.slane %v236, %v245
    %v248 = vmul.f32 %v240, %v246
    %v249 = vld [vmem:[#allocation5] sm:$0x1]
    %v251 = vlaneseq
    %v252 = vshrl.u32 %v251, 7
    %v253 = vsub.s32 0, %v252
    %v254 = vrot.slane %v249, %v253
    %v256 = vadd.f32 %v248, %v254
    %v257 = vmax.f32 %v256, 0.0
    %v258 = vld [vmem:[#allocation7] sm:$0xff]
    %v259 = vld [vmem:[#allocation7 + $0x8] sm:$0xff]
    %v260 = vld [vmem:[#allocation7 + $0x10] sm:$0xff]
    %v261 = vld [vmem:[#allocation7 + $0x18] sm:$0xff]
    %v262 = vld [vmem:[#allocation7 + $0x20] sm:$0xff]
    %v263 = vld [vmem:[#allocation7 + $0x28] sm:$0xff]
    %v264 = vld [vmem:[#allocation7 + $0x30] sm:$0xff]
    %v265 = vld [vmem:[#allocation7 + $0x38] sm:$0xff]
    %v266 = vld [vmem:[#allocation8] sm:$0x1]
    %v268 = vlaneseq
    %v269 = vshrl.u32 %v268, 7
    %v270 = vsub.s32 0, %v269
    %v271 = vrot.slane %v266, %v270
    %vm273 = vcmask 523264
    %v275 = vsel %vm273, %v257, 0
    %277 = vmatprep.subr.mxu0 0.0
    %278 = vmatpush1.msra.mxu0 %v258
    %279 = vmatprep.subr.mxu0 0.0
    %280 = vmatpush1.msra.mxu0 %v259
    %281 = vmatprep.subr.mxu0 0.0
    %282 = vmatpush1.msra.mxu0 %v260
    %283 = vmatprep.subr.mxu0 0.0
    %284 = vmatpush1.msra.mxu0 %v261
    %285 = vmatprep.subr.mxu0 0.0
    %286 = vmatpush1.msra.mxu0 %v262
    %287 = vmatprep.subr.mxu0 0.0
    %288 = vmatpush1.msra.mxu0 %v263
    %289 = vmatprep.subr.mxu0 0.0
    %290 = vmatpush1.msra.mxu0 %v264
    %291 = vmatprep.subr.mxu0 0.0
    %292 = vmatpush1.msra.mxu0 %v265
    %293 = vmatprep.subr.mxu0 0.0
    %294 = vmatpush1.msra.mxu0 0.0
    %295 = vmatprep.subr.mxu0 0.0
    %296 = vmatpush1.msra.mxu0 0.0
    %297 = vmatprep.subr.mxu0 0.0
    %298 = vmatpush1.msra.mxu0 0.0
    %299 = vmatprep.subr.mxu0 0.0
    %300 = vmatpush1.msra.mxu0 0.0
    %301 = vmatprep.subr.mxu0 0.0
    %302 = vmatpush1.msra.mxu0 0.0
    %303 = vmatprep.subr.mxu0 0.0
    %304 = vmatpush1.msra.mxu0 0.0
    %305 = vmatprep.subr.mxu0 0.0
    %306 = vmatpush1.msra.mxu0 0.0
    %307 = vmatprep.subr.mxu0 0.0
    %308 = vmatpush1.msra.mxu0 0.0
    %309 = vmatprep.subr.mxu0 0.0
    %310 = vmatpush1.msra.mxu0 0.0
    %311 = vmatprep.subr.mxu0 0.0
    %312 = vmatpush1.msra.mxu0 0.0
    %313 = vmatprep.subr.mxu0 0.0
    %314 = vmatpush1.msra.mxu0 0.0
    %315 = vmatprep.subr.mxu0 0.0
    %316 = vmatpush1.msra.mxu0 0.0
    %317 = vmatprep.subr.mxu0 0.0
    %318 = vmatpush1.msra.mxu0 0.0
    %319 = vmatprep.subr.mxu0 0.0
    %320 = vmatpush1.msra.mxu0 0.0
    %321 = vmatprep.subr.mxu0 0.0
    %322 = vmatpush1.msra.mxu0 0.0
    %323 = vmatprep.subr.mxu0 0.0
    %324 = vmatpush1.msra.mxu0 0.0
    %325 = vmatprep.subr.mxu0 0.0
    %326 = vmatpush1.msra.mxu0 0.0
    %327 = vmatprep.subr.mxu0 0.0
    %328 = vmatpush1.msra.mxu0 0.0
    %329 = vmatprep.subr.mxu0 0.0
    %330 = vmatpush1.msra.mxu0 0.0
    %331 = vmatprep.subr.mxu0 0.0
    %332 = vmatpush1.msra.mxu0 0.0
    %333 = vmatprep.subr.mxu0 0.0
    %334 = vmatpush1.msra.mxu0 0.0
    %335 = vmatprep.subr.mxu0 0.0
    %336 = vmatpush1.msra.mxu0 0.0
    %337 = vmatprep.subr.mxu0 0.0
    %338 = vmatpush1.msra.mxu0 0.0
    %339 = vmatprep.subr.mxu0 0.0
    %340 = vmatpush1.msra.mxu0 0.0
    %341 = vmatprep.mubr.f32.mxu0 0.0
    %342 = vmatmul.mubr.f32.gmra.mrb[0].mxu0 %v275
    %v343 = vpop.f32.mrb[0].mxu0
    %v344 = vadd.f32 %v271, %v343
    %v345 = vpop.f32.mrb[0].mxu0
    %346 = vdwg.mxu0
    %v347 = vld [vmem:[#allocation10] sm:$0xff]
    %v348 = vld [vmem:[#allocation10 + $0x8] sm:$0xff]
    %v349 = vld [vmem:[#allocation10 + $0x10] sm:$0xf]
    %v350 = vld [vmem:[#allocation11] sm:$0x1]
    %v352 = vlaneseq
    %v353 = vshrl.u32 %v352, 7
    %v354 = vsub.s32 0, %v353
    %v355 = vrot.slane %v350, %v354
    %vm357 = vcmask 162816
    %v359 = vsel %vm357, %v234, 0
    %vm361 = vcmask 1043456
    %v363 = vsel %vm361, %v349, 0
    %365 = vmatprep.subr.mxu0 0.0
    %366 = vmatpush1.msra.mxu0 %v347
    %367 = vmatprep.subr.mxu0 0.0
    %368 = vmatpush1.msra.mxu0 %v348
    %369 = vmatprep.subr.mxu0 0.0
    %370 = vmatpush1.msra.mxu0 %v363
    %371 = vmatprep.subr.mxu0 0.0
    %372 = vmatpush1.msra.mxu0 0.0
    %373 = vmatprep.subr.mxu0 0.0
    %374 = vmatpush1.msra.mxu0 0.0
    %375 = vmatprep.subr.mxu0 0.0
    %376 = vmatpush1.msra.mxu0 0.0
    %377 = vmatprep.subr.mxu0 0.0
    %378 = vmatpush1.msra.mxu0 0.0
    %379 = vmatprep.subr.mxu0 0.0
    %380 = vmatpush1.msra.mxu0 0.0
    %381 = vmatprep.subr.mxu0 0.0
    %382 = vmatpush1.msra.mxu0 0.0
    %383 = vmatprep.subr.mxu0 0.0
    %384 = vmatpush1.msra.mxu0 0.0
    %385 = vmatprep.subr.mxu0 0.0
    %386 = vmatpush1.msra.mxu0 0.0
    %387 = vmatprep.subr.mxu0 0.0
    %388 = vmatpush1.msra.mxu0 0.0
    %389 = vmatprep.subr.mxu0 0.0
    %390 = vmatpush1.msra.mxu0 0.0
    %391 = vmatprep.subr.mxu0 0.0
    %392 = vmatpush1.msra.mxu0 0.0
    %393 = vmatprep.subr.mxu0 0.0
    %394 = vmatpush1.msra.mxu0 0.0
    %395 = vmatprep.subr.mxu0 0.0
    %396 = vmatpush1.msra.mxu0 0.0
    %397 = vmatprep.subr.mxu0 0.0
    %398 = vmatpush1.msra.mxu0 0.0
    %399 = vmatprep.subr.mxu0 0.0
    %400 = vmatpush1.msra.mxu0 0.0
    %401 = vmatprep.subr.mxu0 0.0
    %402 = vmatpush1.msra.mxu0 0.0
    %403 = vmatprep.subr.mxu0 0.0
    %404 = vmatpush1.msra.mxu0 0.0
    %405 = vmatprep.subr.mxu0 0.0
    %406 = vmatpush1.msra.mxu0 0.0
    %407 = vmatprep.subr.mxu0 0.0
    %408 = vmatpush1.msra.mxu0 0.0
    %409 = vmatprep.subr.mxu0 0.0
    %410 = vmatpush1.msra.mxu0 0.0
    %411 = vmatprep.subr.mxu0 0.0
    %412 = vmatpush1.msra.mxu0 0.0
    %413 = vmatprep.subr.mxu0 0.0
    %414 = vmatpush1.msra.mxu0 0.0
    %415 = vmatprep.subr.mxu0 0.0
    %416 = vmatpush1.msra.mxu0 0.0
    %417 = vmatprep.subr.mxu0 0.0
    %418 = vmatpush1.msra.mxu0 0.0
    %419 = vmatprep.subr.mxu0 0.0
    %420 = vmatpush1.msra.mxu0 0.0
    %421 = vmatprep.subr.mxu0 0.0
    %422 = vmatpush1.msra.mxu0 0.0
    %423 = vmatprep.subr.mxu0 0.0
    %424 = vmatpush1.msra.mxu0 0.0
    %425 = vmatprep.subr.mxu0 0.0
    %426 = vmatpush1.msra.mxu0 0.0
    %427 = vmatprep.subr.mxu0 0.0
    %428 = vmatpush1.msra.mxu0 0.0
    %429 = vmatprep.mubr.f32.mxu0 0.0
    %430 = vmatmul.mubr.f32.gmra.mrb[0].mxu0 %v359
    %v431 = vpop.f32.mrb[0].mxu0
    %v432 = vadd.f32 %v355, %v431
    %v433 = vpop.f32.mrb[0].mxu0
    %434 = vdwg.mxu0
    %v435 = vmax.f32 %v432, 0.0
    %v436 = vld [vmem:[#allocation13] sm:$0xff]
    %v437 = vld [vmem:[#allocation13 + $0x8] sm:$0xff]
    %v438 = vld [vmem:[#allocation13 + $0x10] sm:$0xff]
    %v439 = vld [vmem:[#allocation13 + $0x18] sm:$0xff]
    %v440 = vld [vmem:[#allocation13 + $0x20] sm:$0xff]
    %v441 = vld [vmem:[#allocation13 + $0x28] sm:$0xff]
    %v442 = vld [vmem:[#allocation13 + $0x30] sm:$0xff]
    %v443 = vld [vmem:[#allocation13 + $0x38] sm:$0xff]
    %v444 = vld [vmem:[#allocation14] sm:$0x1]
    %v446 = vlaneseq
    %v447 = vshrl.u32 %v446, 7
    %v448 = vsub.s32 0, %v447
    %v449 = vrot.slane %v444, %v448
    %v452 = vsel %vm273, %v435, 0
    %454 = vmatprep.subr.mxu0 0.0
    %455 = vmatpush1.msra.mxu0 %v436
    %456 = vmatprep.subr.mxu0 0.0
    %457 = vmatpush1.msra.mxu0 %v437
    %458 = vmatprep.subr.mxu0 0.0
    %459 = vmatpush1.msra.mxu0 %v438
    %460 = vmatprep.subr.mxu0 0.0
    %461 = vmatpush1.msra.mxu0 %v439
    %462 = vmatprep.subr.mxu0 0.0
    %463 = vmatpush1.msra.mxu0 %v440
    %464 = vmatprep.subr.mxu0 0.0
    %465 = vmatpush1.msra.mxu0 %v441
    %466 = vmatprep.subr.mxu0 0.0
    %467 = vmatpush1.msra.mxu0 %v442
    %468 = vmatprep.subr.mxu0 0.0
    %469 = vmatpush1.msra.mxu0 %v443
    %470 = vmatprep.subr.mxu0 0.0
    %471 = vmatpush1.msra.mxu0 0.0
    %472 = vmatprep.subr.mxu0 0.0
    %473 = vmatpush1.msra.mxu0 0.0
    %474 = vmatprep.subr.mxu0 0.0
    %475 = vmatpush1.msra.mxu0 0.0
    %476 = vmatprep.subr.mxu0 0.0
    %477 = vmatpush1.msra.mxu0 0.0
    %478 = vmatprep.subr.mxu0 0.0
    %479 = vmatpush1.msra.mxu0 0.0
    %480 = vmatprep.subr.mxu0 0.0
    %481 = vmatpush1.msra.mxu0 0.0
    %482 = vmatprep.subr.mxu0 0.0
    %483 = vmatpush1.msra.mxu0 0.0
    %484 = vmatprep.subr.mxu0 0.0
    %485 = vmatpush1.msra.mxu0 0.0
    %486 = vmatprep.subr.mxu0 0.0
    %487 = vmatpush1.msra.mxu0 0.0
    %488 = vmatprep.subr.mxu0 0.0
    %489 = vmatpush1.msra.mxu0 0.0
    %490 = vmatprep.subr.mxu0 0.0
    %491 = vmatpush1.msra.mxu0 0.0
    %492 = vmatprep.subr.mxu0 0.0
    %493 = vmatpush1.msra.mxu0 0.0
    %494 = vmatprep.subr.mxu0 0.0
    %495 = vmatpush1.msra.mxu0 0.0
    %496 = vmatprep.subr.mxu0 0.0
    %497 = vmatpush1.msra.mxu0 0.0
    %498 = vmatprep.subr.mxu0 0.0
    %499 = vmatpush1.msra.mxu0 0.0
    %500 = vmatprep.subr.mxu0 0.0
    %501 = vmatpush1.msra.mxu0 0.0
    %502 = vmatprep.subr.mxu0 0.0
    %503 = vmatpush1.msra.mxu0 0.0
    %504 = vmatprep.subr.mxu0 0.0
    %505 = vmatpush1.msra.mxu0 0.0
    %506 = vmatprep.subr.mxu0 0.0
    %507 = vmatpush1.msra.mxu0 0.0
    %508 = vmatprep.subr.mxu0 0.0
    %509 = vmatpush1.msra.mxu0 0.0
    %510 = vmatprep.subr.mxu0 0.0
    %511 = vmatpush1.msra.mxu0 0.0
    %512 = vmatprep.subr.mxu0 0.0
    %513 = vmatpush1.msra.mxu0 0.0
    %514 = vmatprep.subr.mxu0 0.0
    %515 = vmatpush1.msra.mxu0 0.0
    %516 = vmatprep.subr.mxu0 0.0
    %517 = vmatpush1.msra.mxu0 0.0
    %518 = vmatprep.mubr.f32.mxu0 0.0
    %519 = vmatmul.mubr.f32.gmra.mrb[0].mxu0 %v452
    %v520 = vpop.f32.mrb[0].mxu0
    %v521 = vadd.f32 %v449, %v520
    %v522 = vpop.f32.mrb[0].mxu0
    %523 = vdwg.mxu0
    %v524 = vmax.f32 %v521, 0.0
    %v525 = vld [vmem:[#allocation16] sm:$0xff]
    %v526 = vld [vmem:[#allocation16 + $0x8] sm:$0xff]
    %v527 = vld [vmem:[#allocation16 + $0x10] sm:$0xff]
    %v528 = vld [vmem:[#allocation16 + $0x18] sm:$0xff]
    %v529 = vld [vmem:[#allocation16 + $0x20] sm:$0xff]
    %v530 = vld [vmem:[#allocation16 + $0x28] sm:$0xff]
    %v531 = vld [vmem:[#allocation16 + $0x30] sm:$0xff]
    %v532 = vld [vmem:[#allocation16 + $0x38] sm:$0xff]
    %v533 = vld [vmem:[#allocation17] sm:$0x1]
    %v535 = vlaneseq
    %v536 = vshrl.u32 %v535, 7
    %v537 = vsub.s32 0, %v536
    %v538 = vrot.slane %v533, %v537
    %v541 = vsel %vm273, %v524, 0
    %543 = vmatprep.subr.mxu0 0.0
    %544 = vmatpush1.msra.mxu0 %v525
    %545 = vmatprep.subr.mxu0 0.0
    %546 = vmatpush1.msra.mxu0 %v526
    %547 = vmatprep.subr.mxu0 0.0
    %548 = vmatpush1.msra.mxu0 %v527
    %549 = vmatprep.subr.mxu0 0.0
    %550 = vmatpush1.msra.mxu0 %v528
    %551 = vmatprep.subr.mxu0 0.0
    %552 = vmatpush1.msra.mxu0 %v529
    %553 = vmatprep.subr.mxu0 0.0
    %554 = vmatpush1.msra.mxu0 %v530
    %555 = vmatprep.subr.mxu0 0.0
    %556 = vmatpush1.msra.mxu0 %v531
    %557 = vmatprep.subr.mxu0 0.0
    %558 = vmatpush1.msra.mxu0 %v532
    %559 = vmatprep.subr.mxu0 0.0
    %560 = vmatpush1.msra.mxu0 0.0
    %561 = vmatprep.subr.mxu0 0.0
    %562 = vmatpush1.msra.mxu0 0.0
    %563 = vmatprep.subr.mxu0 0.0
    %564 = vmatpush1.msra.mxu0 0.0
    %565 = vmatprep.subr.mxu0 0.0
    %566 = vmatpush1.msra.mxu0 0.0
    %567 = vmatprep.subr.mxu0 0.0
    %568 = vmatpush1.msra.mxu0 0.0
    %569 = vmatprep.subr.mxu0 0.0
    %570 = vmatpush1.msra.mxu0 0.0
    %571 = vmatprep.subr.mxu0 0.0
    %572 = vmatpush1.msra.mxu0 0.0
    %573 = vmatprep.subr.mxu0 0.0
    %574 = vmatpush1.msra.mxu0 0.0
    %575 = vmatprep.subr.mxu0 0.0
    %576 = vmatpush1.msra.mxu0 0.0
    %577 = vmatprep.subr.mxu0 0.0
    %578 = vmatpush1.msra.mxu0 0.0
    %579 = vmatprep.subr.mxu0 0.0
    %580 = vmatpush1.msra.mxu0 0.0
    %581 = vmatprep.subr.mxu0 0.0
    %582 = vmatpush1.msra.mxu0 0.0
    %583 = vmatprep.subr.mxu0 0.0
    %584 = vmatpush1.msra.mxu0 0.0
    %585 = vmatprep.subr.mxu0 0.0
    %586 = vmatpush1.msra.mxu0 0.0
    %587 = vmatprep.subr.mxu0 0.0
    %588 = vmatpush1.msra.mxu0 0.0
    %589 = vmatprep.subr.mxu0 0.0
    %590 = vmatpush1.msra.mxu0 0.0
    %591 = vmatprep.subr.mxu0 0.0
    %592 = vmatpush1.msra.mxu0 0.0
    %593 = vmatprep.subr.mxu0 0.0
    %594 = vmatpush1.msra.mxu0 0.0
    %595 = vmatprep.subr.mxu0 0.0
    %596 = vmatpush1.msra.mxu0 0.0
    %597 = vmatprep.subr.mxu0 0.0
    %598 = vmatpush1.msra.mxu0 0.0
    %599 = vmatprep.subr.mxu0 0.0
    %600 = vmatpush1.msra.mxu0 0.0
    %601 = vmatprep.subr.mxu0 0.0
    %602 = vmatpush1.msra.mxu0 0.0
    %603 = vmatprep.subr.mxu0 0.0
    %604 = vmatpush1.msra.mxu0 0.0
    %605 = vmatprep.subr.mxu0 0.0
    %606 = vmatpush1.msra.mxu0 0.0
    %607 = vmatprep.mubr.f32.mxu0 0.0
    %608 = vmatmul.mubr.f32.gmra.mrb[0].mxu0 %v541
    %v609 = vpop.f32.mrb[0].mxu0
    %v610 = vadd.f32 %v538, %v609
    %v611 = vpop.f32.mrb[0].mxu0
    %612 = vdwg.mxu0
    %v613 = vld [vmem:[#allocation19] sm:$0xff]
    %v614 = vld [vmem:[#allocation19 + $0x8] sm:$0xff]
    %v615 = vld [vmem:[#allocation19 + $0x10] sm:$0xf]
    %v616 = vld [vmem:[#allocation20] sm:$0x1]
    %v618 = vlaneseq
    %v619 = vshrl.u32 %v618, 7
    %v620 = vsub.s32 0, %v619
    %v621 = vrot.slane %v616, %v620
    %v624 = vsel %vm361, %v615, 0
    %626 = vmatprep.subr.mxu0 0.0
    %627 = vmatpush1.msra.mxu0 %v613
    %628 = vmatprep.subr.mxu0 0.0
    %629 = vmatpush1.msra.mxu0 %v614
    %630 = vmatprep.subr.mxu0 0.0
    %631 = vmatpush1.msra.mxu0 %v624
    %632 = vmatprep.subr.mxu0 0.0
    %633 = vmatpush1.msra.mxu0 0.0
    %634 = vmatprep.subr.mxu0 0.0
    %635 = vmatpush1.msra.mxu0 0.0
    %636 = vmatprep.subr.mxu0 0.0
    %637 = vmatpush1.msra.mxu0 0.0
    %638 = vmatprep.subr.mxu0 0.0
    %639 = vmatpush1.msra.mxu0 0.0
    %640 = vmatprep.subr.mxu0 0.0
    %641 = vmatpush1.msra.mxu0 0.0
    %642 = vmatprep.subr.mxu0 0.0
    %643 = vmatpush1.msra.mxu0 0.0
    %644 = vmatprep.subr.mxu0 0.0
    %645 = vmatpush1.msra.mxu0 0.0
    %646 = vmatprep.subr.mxu0 0.0
    %647 = vmatpush1.msra.mxu0 0.0
    %648 = vmatprep.subr.mxu0 0.0
    %649 = vmatpush1.msra.mxu0 0.0
    %650 = vmatprep.subr.mxu0 0.0
    %651 = vmatpush1.msra.mxu0 0.0
    %652 = vmatprep.subr.mxu0 0.0
    %653 = vmatpush1.msra.mxu0 0.0
    %654 = vmatprep.subr.mxu0 0.0
    %655 = vmatpush1.msra.mxu0 0.0
    %656 = vmatprep.subr.mxu0 0.0
    %657 = vmatpush1.msra.mxu0 0.0
    %658 = vmatprep.subr.mxu0 0.0
    %659 = vmatpush1.msra.mxu0 0.0
    %660 = vmatprep.subr.mxu0 0.0
    %661 = vmatpush1.msra.mxu0 0.0
    %662 = vmatprep.subr.mxu0 0.0
    %663 = vmatpush1.msra.mxu0 0.0
    %664 = vmatprep.subr.mxu0 0.0
    %665 = vmatpush1.msra.mxu0 0.0
    %666 = vmatprep.subr.mxu0 0.0
    %667 = vmatpush1.msra.mxu0 0.0
    %668 = vmatprep.subr.mxu0 0.0
    %669 = vmatpush1.msra.mxu0 0.0
    %670 = vmatprep.subr.mxu0 0.0
    %671 = vmatpush1.msra.mxu0 0.0
    %672 = vmatprep.subr.mxu0 0.0
    %673 = vmatpush1.msra.mxu0 0.0
    %674 = vmatprep.subr.mxu0 0.0
    %675 = vmatpush1.msra.mxu0 0.0
    %676 = vmatprep.subr.mxu0 0.0
    %677 = vmatpush1.msra.mxu0 0.0
    %678 = vmatprep.subr.mxu0 0.0
    %679 = vmatpush1.msra.mxu0 0.0
    %680 = vmatprep.subr.mxu0 0.0
    %681 = vmatpush1.msra.mxu0 0.0
    %682 = vmatprep.subr.mxu0 0.0
    %683 = vmatpush1.msra.mxu0 0.0
    %684 = vmatprep.subr.mxu0 0.0
    %685 = vmatpush1.msra.mxu0 0.0
    %686 = vmatprep.subr.mxu0 0.0
    %687 = vmatpush1.msra.mxu0 0.0
    %688 = vmatprep.subr.mxu0 0.0
    %689 = vmatpush1.msra.mxu0 0.0
    %690 = vmatprep.mubr.f32.mxu0 0.0
    %691 = vmatmul.mubr.f32.gmra.mrb[0].mxu0 %v359
    %v692 = vpop.f32.mrb[0].mxu0
    %v693 = vadd.f32 %v621, %v692
    %v694 = vpop.f32.mrb[0].mxu0
    %695 = vdwg.mxu0
    %v696 = vmax.f32 %v693, 0.0
    %v697 = vld [vmem:[#allocation22] sm:$0xff]
    %v698 = vld [vmem:[#allocation22 + $0x8] sm:$0xff]
    %v699 = vld [vmem:[#allocation22 + $0x10] sm:$0xff]
    %v700 = vld [vmem:[#allocation22 + $0x18] sm:$0xff]
    %v701 = vld [vmem:[#allocation22 + $0x20] sm:$0xff]
    %v702 = vld [vmem:[#allocation22 + $0x28] sm:$0xff]
    %v703 = vld [vmem:[#allocation22 + $0x30] sm:$0xff]
    %v704 = vld [vmem:[#allocation22 + $0x38] sm:$0xff]
    %v705 = vld [vmem:[#allocation23] sm:$0x1]
    %v707 = vlaneseq
    %v708 = vshrl.u32 %v707, 7
    %v709 = vsub.s32 0, %v708
    %v710 = vrot.slane %v705, %v709
    %v713 = vsel %vm273, %v696, 0
    %715 = vmatprep.subr.mxu0 0.0
    %716 = vmatpush1.msra.mxu0 %v697
    %717 = vmatprep.subr.mxu0 0.0
    %718 = vmatpush1.msra.mxu0 %v698
    %719 = vmatprep.subr.mxu0 0.0
    %720 = vmatpush1.msra.mxu0 %v699
    %721 = vmatprep.subr.mxu0 0.0
    %722 = vmatpush1.msra.mxu0 %v700
    %723 = vmatprep.subr.mxu0 0.0
    %724 = vmatpush1.msra.mxu0 %v701
    %725 = vmatprep.subr.mxu0 0.0
    %726 = vmatpush1.msra.mxu0 %v702
    %727 = vmatprep.subr.mxu0 0.0
    %728 = vmatpush1.msra.mxu0 %v703
    %729 = vmatprep.subr.mxu0 0.0
    %730 = vmatpush1.msra.mxu0 %v704
    %731 = vmatprep.subr.mxu0 0.0
    %732 = vmatpush1.msra.mxu0 0.0
    %733 = vmatprep.subr.mxu0 0.0
    %734 = vmatpush1.msra.mxu0 0.0
    %735 = vmatprep.subr.mxu0 0.0
    %736 = vmatpush1.msra.mxu0 0.0
    %737 = vmatprep.subr.mxu0 0.0
    %738 = vmatpush1.msra.mxu0 0.0
    %739 = vmatprep.subr.mxu0 0.0
    %740 = vmatpush1.msra.mxu0 0.0
    %741 = vmatprep.subr.mxu0 0.0
    %742 = vmatpush1.msra.mxu0 0.0
    %743 = vmatprep.subr.mxu0 0.0
    %744 = vmatpush1.msra.mxu0 0.0
    %745 = vmatprep.subr.mxu0 0.0
    %746 = vmatpush1.msra.mxu0 0.0
    %747 = vmatprep.subr.mxu0 0.0
    %748 = vmatpush1.msra.mxu0 0.0
    %749 = vmatprep.subr.mxu0 0.0
    %750 = vmatpush1.msra.mxu0 0.0
    %751 = vmatprep.subr.mxu0 0.0
    %752 = vmatpush1.msra.mxu0 0.0
    %753 = vmatprep.subr.mxu0 0.0
    %754 = vmatpush1.msra.mxu0 0.0
    %755 = vmatprep.subr.mxu0 0.0
    %756 = vmatpush1.msra.mxu0 0.0
    %757 = vmatprep.subr.mxu0 0.0
    %758 = vmatpush1.msra.mxu0 0.0
    %759 = vmatprep.subr.mxu0 0.0
    %760 = vmatpush1.msra.mxu0 0.0
    %761 = vmatprep.subr.mxu0 0.0
    %762 = vmatpush1.msra.mxu0 0.0
    %763 = vmatprep.subr.mxu0 0.0
    %764 = vmatpush1.msra.mxu0 0.0
    %765 = vmatprep.subr.mxu0 0.0
    %766 = vmatpush1.msra.mxu0 0.0
    %767 = vmatprep.subr.mxu0 0.0
    %768 = vmatpush1.msra.mxu0 0.0
    %769 = vmatprep.subr.mxu0 0.0
    %770 = vmatpush1.msra.mxu0 0.0
    %771 = vmatprep.subr.mxu0 0.0
    %772 = vmatpush1.msra.mxu0 0.0
    %773 = vmatprep.subr.mxu0 0.0
    %774 = vmatpush1.msra.mxu0 0.0
    %775 = vmatprep.subr.mxu0 0.0
    %776 = vmatpush1.msra.mxu0 0.0
    %777 = vmatprep.subr.mxu0 0.0
    %778 = vmatpush1.msra.mxu0 0.0
    %779 = vmatprep.mubr.f32.mxu0 0.0
    %780 = vmatmul.mubr.f32.gmra.mrb[0].mxu0 %v713
    %v781 = vpop.f32.mrb[0].mxu0
    %v782 = vadd.f32 %v710, %v781
    %v783 = vpop.f32.mrb[0].mxu0
    %784 = vdwg.mxu0
    %v785 = vmax.f32 %v782, 0.0
    %v786 = vld [vmem:[%s16] sm:$0xff]
    %v787 = vld [vmem:[%s16 + $0x8] sm:$0xff]
    %v788 = vld [vmem:[%s16 + $0x10] sm:$0xff]
    %v789 = vld [vmem:[%s16 + $0x18] sm:$0xff]
    %v790 = vld [vmem:[%s16 + $0x20] sm:$0xff]
    %v791 = vld [vmem:[%s16 + $0x28] sm:$0xff]
    %v792 = vld [vmem:[%s16 + $0x30] sm:$0xff]
    %v793 = vld [vmem:[%s16 + $0x38] sm:$0xff]
    %v794 = vld [vmem:[%s17] sm:$0x1]
    %v796 = vlaneseq
    %v797 = vshrl.u32 %v796, 7
    %v798 = vsub.s32 0, %v797
    %v799 = vrot.slane %v794, %v798
    %v802 = vsel %vm273, %v785, 0
    %804 = vmatprep.subr.mxu0 0.0
    %805 = vmatpush1.msra.mxu0 %v786
    %806 = vmatprep.subr.mxu0 0.0
    %807 = vmatpush1.msra.mxu0 %v787
    %808 = vmatprep.subr.mxu0 0.0
    %809 = vmatpush1.msra.mxu0 %v788
    %810 = vmatprep.subr.mxu0 0.0
    %811 = vmatpush1.msra.mxu0 %v789
    %812 = vmatprep.subr.mxu0 0.0
    %813 = vmatpush1.msra.mxu0 %v790
    %814 = vmatprep.subr.mxu0 0.0
    %815 = vmatpush1.msra.mxu0 %v791
    %816 = vmatprep.subr.mxu0 0.0
    %817 = vmatpush1.msra.mxu0 %v792
    %818 = vmatprep.subr.mxu0 0.0
    %819 = vmatpush1.msra.mxu0 %v793
    %820 = vmatprep.subr.mxu0 0.0
    %821 = vmatpush1.msra.mxu0 0.0
    %822 = vmatprep.subr.mxu0 0.0
    %823 = vmatpush1.msra.mxu0 0.0
    %824 = vmatprep.subr.mxu0 0.0
    %825 = vmatpush1.msra.mxu0 0.0
    %826 = vmatprep.subr.mxu0 0.0
    %827 = vmatpush1.msra.mxu0 0.0
    %828 = vmatprep.subr.mxu0 0.0
    %829 = vmatpush1.msra.mxu0 0.0
    %830 = vmatprep.subr.mxu0 0.0
    %831 = vmatpush1.msra.mxu0 0.0
    %832 = vmatprep.subr.mxu0 0.0
    %833 = vmatpush1.msra.mxu0 0.0
    %834 = vmatprep.subr.mxu0 0.0
    %835 = vmatpush1.msra.mxu0 0.0
    %836 = vmatprep.subr.mxu0 0.0
    %837 = vmatpush1.msra.mxu0 0.0
    %838 = vmatprep.subr.mxu0 0.0
    %839 = vmatpush1.msra.mxu0 0.0
    %840 = vmatprep.subr.mxu0 0.0
    %841 = vmatpush1.msra.mxu0 0.0
    %842 = vmatprep.subr.mxu0 0.0
    %843 = vmatpush1.msra.mxu0 0.0
    %844 = vmatprep.subr.mxu0 0.0
    %845 = vmatpush1.msra.mxu0 0.0
    %846 = vmatprep.subr.mxu0 0.0
    %847 = vmatpush1.msra.mxu0 0.0
    %848 = vmatprep.subr.mxu0 0.0
    %849 = vmatpush1.msra.mxu0 0.0
    %850 = vmatprep.subr.mxu0 0.0
    %851 = vmatpush1.msra.mxu0 0.0
    %852 = vmatprep.subr.mxu0 0.0
    %853 = vmatpush1.msra.mxu0 0.0
    %854 = vmatprep.subr.mxu0 0.0
    %855 = vmatpush1.msra.mxu0 0.0
    %856 = vmatprep.subr.mxu0 0.0
    %857 = vmatpush1.msra.mxu0 0.0
    %858 = vmatprep.subr.mxu0 0.0
    %859 = vmatpush1.msra.mxu0 0.0
    %860 = vmatprep.subr.mxu0 0.0
    %861 = vmatpush1.msra.mxu0 0.0
    %862 = vmatprep.subr.mxu0 0.0
    %863 = vmatpush1.msra.mxu0 0.0
    %864 = vmatprep.subr.mxu0 0.0
    %865 = vmatpush1.msra.mxu0 0.0
    %866 = vmatprep.subr.mxu0 0.0
    %867 = vmatpush1.msra.mxu0 0.0
    %868 = vmatprep.mubr.f32.mxu0 0.0
    %869 = vmatmul.mubr.f32.gmra.mrb[0].mxu0 %v802
    %v870 = vpop.f32.mrb[0].mxu0
    %v871 = vadd.f32 %v799, %v870
    %v872 = vpop.f32.mrb[0].mxu0
    %873 = vdwg.mxu0
    %v874 = vlaneseq
    %v875 = vshrl.u32 %v874, 7
    %v876 = vsub.s32 0, %v875
    %v877 = vrot.slane %v344, %v876
    %879 = vbcast.lane.b32.xlu0 %v877, 256
    %v880 = vpop.permute.xlu0 %879
    %s882 = sor.u32 256, 8
    %883 = vbcast.lane.b32.xlu0 %v877, %s882
    %v884 = vpop.permute.xlu0 %883
    %s886 = sor.u32 256, 16
    %887 = vbcast.lane.b32.xlu0 %v877, %s886
    %v888 = vpop.permute.xlu0 %887
    %s890 = sor.u32 256, 24
    %891 = vbcast.lane.b32.xlu0 %v877, %s890
    %v892 = vpop.permute.xlu0 %891
    %s894 = sor.u32 256, 32
    %895 = vbcast.lane.b32.xlu0 %v877, %s894
    %v896 = vpop.permute.xlu0 %895
    %s898 = sor.u32 256, 40
    %899 = vbcast.lane.b32.xlu0 %v877, %s898
    %v900 = vpop.permute.xlu0 %899
    %s902 = sor.u32 256, 48
    %903 = vbcast.lane.b32.xlu0 %v877, %s902
    %v904 = vpop.permute.xlu0 %903
    %s906 = sor.u32 256, 56
    %907 = vbcast.lane.b32.xlu0 %v877, %s906
    %v908 = vpop.permute.xlu0 %907
    %v909 = vlaneseq
    %v910 = vshrl.u32 %v909, 7
    %v911 = vsub.s32 1, %v910
    %v912 = vrot.slane %v344, %v911
    %914 = vbcast.lane.b32.xlu0 %v912, 256
    %v915 = vpop.permute.xlu0 %914
    %s917 = sor.u32 256, 8
    %918 = vbcast.lane.b32.xlu0 %v912, %s917
    %v919 = vpop.permute.xlu0 %918
    %s921 = sor.u32 256, 16
    %922 = vbcast.lane.b32.xlu0 %v912, %s921
    %v923 = vpop.permute.xlu0 %922
    %s925 = sor.u32 256, 24
    %926 = vbcast.lane.b32.xlu0 %v912, %s925
    %v927 = vpop.permute.xlu0 %926
    %s929 = sor.u32 256, 32
    %930 = vbcast.lane.b32.xlu0 %v912, %s929
    %v931 = vpop.permute.xlu0 %930
    %s933 = sor.u32 256, 40
    %934 = vbcast.lane.b32.xlu0 %v912, %s933
    %v935 = vpop.permute.xlu0 %934
    %s937 = sor.u32 256, 48
    %938 = vbcast.lane.b32.xlu0 %v912, %s937
    %v939 = vpop.permute.xlu0 %938
    %s941 = sor.u32 256, 56
    %942 = vbcast.lane.b32.xlu0 %v912, %s941
    %v943 = vpop.permute.xlu0 %942
    %v944 = vlaneseq
    %v945 = vshrl.u32 %v944, 7
    %v946 = vsub.s32 2, %v945
    %v947 = vrot.slane %v344, %v946
    %949 = vbcast.lane.b32.xlu0 %v947, 256
    %v950 = vpop.permute.xlu0 %949
    %s952 = sor.u32 256, 8
    %953 = vbcast.lane.b32.xlu0 %v947, %s952
    %v954 = vpop.permute.xlu0 %953
    %s956 = sor.u32 256, 16
    %957 = vbcast.lane.b32.xlu0 %v947, %s956
    %v958 = vpop.permute.xlu0 %957
    %s960 = sor.u32 256, 24
    %961 = vbcast.lane.b32.xlu0 %v947, %s960
    %v962 = vpop.permute.xlu0 %961
    %s964 = sor.u32 256, 32
    %965 = vbcast.lane.b32.xlu0 %v947, %s964
    %v966 = vpop.permute.xlu0 %965
    %s968 = sor.u32 256, 40
    %969 = vbcast.lane.b32.xlu0 %v947, %s968
    %v970 = vpop.permute.xlu0 %969
    %s972 = sor.u32 256, 48
    %973 = vbcast.lane.b32.xlu0 %v947, %s972
    %v974 = vpop.permute.xlu0 %973
    %s976 = sor.u32 256, 56
    %977 = vbcast.lane.b32.xlu0 %v947, %s976
    %v978 = vpop.permute.xlu0 %977
    %v979 = vlaneseq
    %v980 = vshrl.u32 %v979, 7
    %v981 = vsub.s32 3, %v980
    %v982 = vrot.slane %v344, %v981
    %984 = vbcast.lane.b32.xlu0 %v982, 256
    %v985 = vpop.permute.xlu0 %984
    %s987 = sor.u32 256, 8
    %988 = vbcast.lane.b32.xlu0 %v982, %s987
    %v989 = vpop.permute.xlu0 %988
    %s991 = sor.u32 256, 16
    %992 = vbcast.lane.b32.xlu0 %v982, %s991
    %v993 = vpop.permute.xlu0 %992
    %s995 = sor.u32 256, 24
    %996 = vbcast.lane.b32.xlu0 %v982, %s995
    %v997 = vpop.permute.xlu0 %996
    %s999 = sor.u32 256, 32
    %1000 = vbcast.lane.b32.xlu0 %v982, %s999
    %v1001 = vpop.permute.xlu0 %1000
    %s1003 = sor.u32 256, 40
    %1004 = vbcast.lane.b32.xlu0 %v982, %s1003
    %v1005 = vpop.permute.xlu0 %1004
    %s1007 = sor.u32 256, 48
    %1008 = vbcast.lane.b32.xlu0 %v982, %s1007
    %v1009 = vpop.permute.xlu0 %1008
    %s1011 = sor.u32 256, 56
    %1012 = vbcast.lane.b32.xlu0 %v982, %s1011
    %v1013 = vpop.permute.xlu0 %1012
    %v1016 = vunpack.c.l.s4 1966171168
    %v1017 = vunpack.c.0.s8 %v1016
    %v1018 = vlaneseq
    %v1019 = vshrl.u32 %v1018, 7
    %v1020 = vsub.s32 %v1017, %v1019
    %v1021 = vrot.slane %v610, %v1020
    %v1022 = vcombine.high %v1021, %v1021
    %v1024 = vunpack.c.l.s4 1966171168
    %v1025 = vunpack.c.0.s8 %v1024
    %v1026 = vlaneseq
    %v1027 = vshrl.u32 %v1026, 7
    %v1028 = vsub.s32 %v1025, %v1027
    %v1029 = vrot.slane %v1021, %v1028
    %v1031 = vunpack.c.l.s4 1966171168
    %v1032 = vunpack.c.0.s8 %v1031
    %v1033 = vlaneseq
    %v1034 = vshrl.u32 %v1033, 7
    %v1035 = vsub.s32 %v1032, %v1034
    %v1036 = vrot.slane %v1022, %v1035
    %v1037 = vcombine.high %v1029, %v1029
    %v1038 = vcombine.high %v1036, %v1036
    %v1043 = vmul.f32 %v1029, 0.125
    %v1044 = vmul.f32 %v1036, 0.125
    %v1045 = vmul.f32 %v1037, 0.125
    %v1046 = vmul.f32 %v1038, 0.125
    %v1051 = vlaneseq
    %v1052 = vshrl.u32 %v1051, 7
    %v1053 = vsub.s32 0, %v1052
    %v1054 = vrot.slane %v1043, %v1053
    %v1055 = vlaneseq
    %v1056 = vshrl.u32 %v1055, 7
    %v1057 = vsub.s32 0, %v1056
    %v1058 = vrot.slane %v1044, %v1057
    %v1059 = vlaneseq
    %v1060 = vshrl.u32 %v1059, 7
    %v1061 = vsub.s32 0, %v1060
    %v1062 = vrot.slane %v1045, %v1061
    %v1063 = vlaneseq
    %v1064 = vshrl.u32 %v1063, 7
    %v1065 = vsub.s32 0, %v1064
    %v1066 = vrot.slane %v1046, %v1065
    %v1071 = vmul.f32 %v880, %v1054
    %v1072 = vmul.f32 %v884, %v1054
    %v1073 = vmul.f32 %v888, %v1054
    %v1074 = vmul.f32 %v892, %v1054
    %v1075 = vmul.f32 %v896, %v1054
    %v1076 = vmul.f32 %v900, %v1054
    %v1077 = vmul.f32 %v904, %v1054
    %v1078 = vmul.f32 %v908, %v1054
    %v1079 = vmul.f32 %v915, %v1058
    %v1080 = vmul.f32 %v919, %v1058
    %v1081 = vmul.f32 %v923, %v1058
    %v1082 = vmul.f32 %v927, %v1058
    %v1083 = vmul.f32 %v931, %v1058
    %v1084 = vmul.f32 %v935, %v1058
    %v1085 = vmul.f32 %v939, %v1058
    %v1086 = vmul.f32 %v943, %v1058
    %v1087 = vmul.f32 %v950, %v1062
    %v1088 = vmul.f32 %v954, %v1062
    %v1089 = vmul.f32 %v958, %v1062
    %v1090 = vmul.f32 %v962, %v1062
    %v1091 = vmul.f32 %v966, %v1062
    %v1092 = vmul.f32 %v970, %v1062
    %v1093 = vmul.f32 %v974, %v1062
    %v1094 = vmul.f32 %v978, %v1062
    %v1095 = vmul.f32 %v985, %v1066
    %v1096 = vmul.f32 %v989, %v1066
    %v1097 = vmul.f32 %v993, %v1066
    %v1098 = vmul.f32 %v997, %v1066
    %v1099 = vmul.f32 %v1001, %v1066
    %v1100 = vmul.f32 %v1005, %v1066
    %v1101 = vmul.f32 %v1009, %v1066
    %v1102 = vmul.f32 %v1013, %v1066
    %v1103 = vsel %vm273, %v1071, -inf
    %1104 = vmax.xlane.f32.xlu0 %v1103
    %v1105 = vpop.xlane.xlu0 %1104
    %v1106 = vsel %vm273, %v1072, -inf
    %1107 = vmax.xlane.f32.xlu0 %v1106
    %v1108 = vpop.xlane.xlu0 %1107
    %v1109 = vsel %vm273, %v1073, -inf
    %1110 = vmax.xlane.f32.xlu0 %v1109
    %v1111 = vpop.xlane.xlu0 %1110
    %v1112 = vsel %vm273, %v1074, -inf
    %1113 = vmax.xlane.f32.xlu0 %v1112
    %v1114 = vpop.xlane.xlu0 %1113
    %v1115 = vsel %vm273, %v1075, -inf
    %1116 = vmax.xlane.f32.xlu0 %v1115
    %v1117 = vpop.xlane.xlu0 %1116
    %v1118 = vsel %vm273, %v1076, -inf
    %1119 = vmax.xlane.f32.xlu0 %v1118
    %v1120 = vpop.xlane.xlu0 %1119
    %v1121 = vsel %vm273, %v1077, -inf
    %1122 = vmax.xlane.f32.xlu0 %v1121
    %v1123 = vpop.xlane.xlu0 %1122
    %v1124 = vsel %vm273, %v1078, -inf
    %1125 = vmax.xlane.f32.xlu0 %v1124
    %v1126 = vpop.xlane.xlu0 %1125
    %v1127 = vsel %vm273, %v1079, -inf
    %1128 = vmax.xlane.f32.xlu0 %v1127
    %v1129 = vpop.xlane.xlu0 %1128
    %v1130 = vsel %vm273, %v1080, -inf
    %1131 = vmax.xlane.f32.xlu0 %v1130
    %v1132 = vpop.xlane.xlu0 %1131
    %v1133 = vsel %vm273, %v1081, -inf
    %1134 = vmax.xlane.f32.xlu0 %v1133
    %v1135 = vpop.xlane.xlu0 %1134
    %v1136 = vsel %vm273, %v1082, -inf
    %1137 = vmax.xlane.f32.xlu0 %v1136
    %v1138 = vpop.xlane.xlu0 %1137
    %v1139 = vsel %vm273, %v1083, -inf
    %1140 = vmax.xlane.f32.xlu0 %v1139
    %v1141 = vpop.xlane.xlu0 %1140
    %v1142 = vsel %vm273, %v1084, -inf
    %1143 = vmax.xlane.f32.xlu0 %v1142
    %v1144 = vpop.xlane.xlu0 %1143
    %v1145 = vsel %vm273, %v1085, -inf
    %1146 = vmax.xlane.f32.xlu0 %v1145
    %v1147 = vpop.xlane.xlu0 %1146
    %v1148 = vsel %vm273, %v1086, -inf
    %1149 = vmax.xlane.f32.xlu0 %v1148
    %v1150 = vpop.xlane.xlu0 %1149
    %v1151 = vsel %vm273, %v1087, -inf
    %1152 = vmax.xlane.f32.xlu0 %v1151
    %v1153 = vpop.xlane.xlu0 %1152
    %v1154 = vsel %vm273, %v1088, -inf
    %1155 = vmax.xlane.f32.xlu0 %v1154
    %v1156 = vpop.xlane.xlu0 %1155
    %v1157 = vsel %vm273, %v1089, -inf
    %1158 = vmax.xlane.f32.xlu0 %v1157
    %v1159 = vpop.xlane.xlu0 %1158
    %v1160 = vsel %vm273, %v1090, -inf
    %1161 = vmax.xlane.f32.xlu0 %v1160
    %v1162 = vpop.xlane.xlu0 %1161
    %v1163 = vsel %vm273, %v1091, -inf
    %1164 = vmax.xlane.f32.xlu0 %v1163
    %v1165 = vpop.xlane.xlu0 %1164
    %v1166 = vsel %vm273, %v1092, -inf
    %1167 = vmax.xlane.f32.xlu0 %v1166
    %v1168 = vpop.xlane.xlu0 %1167
    %v1169 = vsel %vm273, %v1093, -inf
    %1170 = vmax.xlane.f32.xlu0 %v1169
    %v1171 = vpop.xlane.xlu0 %1170
    %v1172 = vsel %vm273, %v1094, -inf
    %1173 = vmax.xlane.f32.xlu0 %v1172
    %v1174 = vpop.xlane.xlu0 %1173
    %v1175 = vsel %vm273, %v1095, -inf
    %1176 = vmax.xlane.f32.xlu0 %v1175
    %v1177 = vpop.xlane.xlu0 %1176
    %v1178 = vsel %vm273, %v1096, -inf
    %1179 = vmax.xlane.f32.xlu0 %v1178
    %v1180 = vpop.xlane.xlu0 %1179
    %v1181 = vsel %vm273, %v1097, -inf
    %1182 = vmax.xlane.f32.xlu0 %v1181
    %v1183 = vpop.xlane.xlu0 %1182
    %v1184 = vsel %vm273, %v1098, -inf
    %1185 = vmax.xlane.f32.xlu0 %v1184
    %v1186 = vpop.xlane.xlu0 %1185
    %v1187 = vsel %vm273, %v1099, -inf
    %1188 = vmax.xlane.f32.xlu0 %v1187
    %v1189 = vpop.xlane.xlu0 %1188
    %v1190 = vsel %vm273, %v1100, -inf
    %1191 = vmax.xlane.f32.xlu0 %v1190
    %v1192 = vpop.xlane.xlu0 %1191
    %v1193 = vsel %vm273, %v1101, -inf
    %1194 = vmax.xlane.f32.xlu0 %v1193
    %v1195 = vpop.xlane.xlu0 %1194
    %v1196 = vsel %vm273, %v1102, -inf
    %1197 = vmax.xlane.f32.xlu0 %v1196
    %v1198 = vpop.xlane.xlu0 %1197
    %v1199 = vsub.f32 %v1071, %v1105
    %v1200 = vsub.f32 %v1072, %v1108
    %v1201 = vsub.f32 %v1073, %v1111
    %v1202 = vsub.f32 %v1074, %v1114
    %v1203 = vsub.f32 %v1075, %v1117
    %v1204 = vsub.f32 %v1076, %v1120
    %v1205 = vsub.f32 %v1077, %v1123
    %v1206 = vsub.f32 %v1078, %v1126
    %v1207 = vsub.f32 %v1079, %v1129
    %v1208 = vsub.f32 %v1080, %v1132
    %v1209 = vsub.f32 %v1081, %v1135
    %v1210 = vsub.f32 %v1082, %v1138
    %v1211 = vsub.f32 %v1083, %v1141
    %v1212 = vsub.f32 %v1084, %v1144
    %v1213 = vsub.f32 %v1085, %v1147
    %v1214 = vsub.f32 %v1086, %v1150
    %v1215 = vsub.f32 %v1087, %v1153
    %v1216 = vsub.f32 %v1088, %v1156
    %v1217 = vsub.f32 %v1089, %v1159
    %v1218 = vsub.f32 %v1090, %v1162
    %v1219 = vsub.f32 %v1091, %v1165
    %v1220 = vsub.f32 %v1092, %v1168
    %v1221 = vsub.f32 %v1093, %v1171
    %v1222 = vsub.f32 %v1094, %v1174
    %v1223 = vsub.f32 %v1095, %v1177
    %v1224 = vsub.f32 %v1096, %v1180
    %v1225 = vsub.f32 %v1097, %v1183
    %v1226 = vsub.f32 %v1098, %v1186
    %v1227 = vsub.f32 %v1099, %v1189
    %v1228 = vsub.f32 %v1100, %v1192
    %v1229 = vsub.f32 %v1101, %v1195
    %v1230 = vsub.f32 %v1102, %v1198
    %v1231 = vmul.f32 %v1199, 1.442695
    %v1232 = vpow.pop %v1231
    %v1233 = vmul.f32 %v1200, 1.442695
    %v1234 = vpow.pop %v1233
    %v1235 = vmul.f32 %v1201, 1.442695
    %v1236 = vpow.pop %v1235
    %v1237 = vmul.f32 %v1202, 1.442695
    %v1238 = vpow.pop %v1237
    %v1239 = vmul.f32 %v1203, 1.442695
    %v1240 = vpow.pop %v1239
    %v1241 = vmul.f32 %v1204, 1.442695
    %v1242 = vpow.pop %v1241
    %v1243 = vmul.f32 %v1205, 1.442695
    %v1244 = vpow.pop %v1243
    %v1245 = vmul.f32 %v1206, 1.442695
    %v1246 = vpow.pop %v1245
    %v1247 = vmul.f32 %v1207, 1.442695
    %v1248 = vpow.pop %v1247
    %v1249 = vmul.f32 %v1208, 1.442695
    %v1250 = vpow.pop %v1249
    %v1251 = vmul.f32 %v1209, 1.442695
    %v1252 = vpow.pop %v1251
    %v1253 = vmul.f32 %v1210, 1.442695
    %v1254 = vpow.pop %v1253
    %v1255 = vmul.f32 %v1211, 1.442695
    %v1256 = vpow.pop %v1255
    %v1257 = vmul.f32 %v1212, 1.442695
    %v1258 = vpow.pop %v1257
    %v1259 = vmul.f32 %v1213, 1.442695
    %v1260 = vpow.pop %v1259
    %v1261 = vmul.f32 %v1214, 1.442695
    %v1262 = vpow.pop %v1261
    %v1263 = vmul.f32 %v1215, 1.442695
    %v1264 = vpow.pop %v1263
    %v1265 = vmul.f32 %v1216, 1.442695
    %v1266 = vpow.pop %v1265
    %v1267 = vmul.f32 %v1217, 1.442695
    %v1268 = vpow.pop %v1267
    %v1269 = vmul.f32 %v1218, 1.442695
    %v1270 = vpow.pop %v1269
    %v1271 = vmul.f32 %v1219, 1.442695
    %v1272 = vpow.pop %v1271
    %v1273 = vmul.f32 %v1220, 1.442695
    %v1274 = vpow.pop %v1273
    %v1275 = vmul.f32 %v1221, 1.442695
    %v1276 = vpow.pop %v1275
    %v1277 = vmul.f32 %v1222, 1.442695
    %v1278 = vpow.pop %v1277
    %v1279 = vmul.f32 %v1223, 1.442695
    %v1280 = vpow.pop %v1279
    %v1281 = vmul.f32 %v1224, 1.442695
    %v1282 = vpow.pop %v1281
    %v1283 = vmul.f32 %v1225, 1.442695
    %v1284 = vpow.pop %v1283
    %v1285 = vmul.f32 %v1226, 1.442695
    %v1286 = vpow.pop %v1285
    %v1287 = vmul.f32 %v1227, 1.442695
    %v1288 = vpow.pop %v1287
    %v1289 = vmul.f32 %v1228, 1.442695
    %v1290 = vpow.pop %v1289
    %v1291 = vmul.f32 %v1229, 1.442695
    %v1292 = vpow.pop %v1291
    %v1293 = vmul.f32 %v1230, 1.442695
    %v1294 = vpow.pop %v1293
    %v1295 = vsel %vm273, %v1232, 0.0
    %1296 = vadd.xlane.f32.xlu0 %v1295
    %v1297 = vpop.xlane.xlu0 %1296
    %v1298 = vsel %vm273, %v1234, 0.0
    %1299 = vadd.xlane.f32.xlu0 %v1298
    %v1300 = vpop.xlane.xlu0 %1299
    %v1301 = vsel %vm273, %v1236, 0.0
    %1302 = vadd.xlane.f32.xlu0 %v1301
    %v1303 = vpop.xlane.xlu0 %1302
    %v1304 = vsel %vm273, %v1238, 0.0
    %1305 = vadd.xlane.f32.xlu0 %v1304
    %v1306 = vpop.xlane.xlu0 %1305
    %v1307 = vsel %vm273, %v1240, 0.0
    %1308 = vadd.xlane.f32.xlu0 %v1307
    %v1309 = vpop.xlane.xlu0 %1308
    %v1310 = vsel %vm273, %v1242, 0.0
    %1311 = vadd.xlane.f32.xlu0 %v1310
    %v1312 = vpop.xlane.xlu0 %1311
    %v1313 = vsel %vm273, %v1244, 0.0
    %1314 = vadd.xlane.f32.xlu0 %v1313
    %v1315 = vpop.xlane.xlu0 %1314
    %v1316 = vsel %vm273, %v1246, 0.0
    %1317 = vadd.xlane.f32.xlu0 %v1316
    %v1318 = vpop.xlane.xlu0 %1317
    %v1319 = vsel %vm273, %v1248, 0.0
    %1320 = vadd.xlane.f32.xlu0 %v1319
    %v1321 = vpop.xlane.xlu0 %1320
    %v1322 = vsel %vm273, %v1250, 0.0
    %1323 = vadd.xlane.f32.xlu0 %v1322
    %v1324 = vpop.xlane.xlu0 %1323
    %v1325 = vsel %vm273, %v1252, 0.0
    %1326 = vadd.xlane.f32.xlu0 %v1325
    %v1327 = vpop.xlane.xlu0 %1326
    %v1328 = vsel %vm273, %v1254, 0.0
    %1329 = vadd.xlane.f32.xlu0 %v1328
    %v1330 = vpop.xlane.xlu0 %1329
    %v1331 = vsel %vm273, %v1256, 0.0
    %1332 = vadd.xlane.f32.xlu0 %v1331
    %v1333 = vpop.xlane.xlu0 %1332
    %v1334 = vsel %vm273, %v1258, 0.0
    %1335 = vadd.xlane.f32.xlu0 %v1334
    %v1336 = vpop.xlane.xlu0 %1335
    %v1337 = vsel %vm273, %v1260, 0.0
    %1338 = vadd.xlane.f32.xlu0 %v1337
    %v1339 = vpop.xlane.xlu0 %1338
    %v1340 = vsel %vm273, %v1262, 0.0
    %1341 = vadd.xlane.f32.xlu0 %v1340
    %v1342 = vpop.xlane.xlu0 %1341
    %v1343 = vsel %vm273, %v1264, 0.0
    %1344 = vadd.xlane.f32.xlu0 %v1343
    %v1345 = vpop.xlane.xlu0 %1344
    %v1346 = vsel %vm273, %v1266, 0.0
    %1347 = vadd.xlane.f32.xlu0 %v1346
    %v1348 = vpop.xlane.xlu0 %1347
    %v1349 = vsel %vm273, %v1268, 0.0
    %1350 = vadd.xlane.f32.xlu0 %v1349
    %v1351 = vpop.xlane.xlu0 %1350
    %v1352 = vsel %vm273, %v1270, 0.0
    %1353 = vadd.xlane.f32.xlu0 %v1352
    %v1354 = vpop.xlane.xlu0 %1353
    %v1355 = vsel %vm273, %v1272, 0.0
    %1356 = vadd.xlane.f32.xlu0 %v1355
    %v1357 = vpop.xlane.xlu0 %1356
    %v1358 = vsel %vm273, %v1274, 0.0
    %1359 = vadd.xlane.f32.xlu0 %v1358
    %v1360 = vpop.xlane.xlu0 %1359
    %v1361 = vsel %vm273, %v1276, 0.0
    %1362 = vadd.xlane.f32.xlu0 %v1361
    %v1363 = vpop.xlane.xlu0 %1362
    %v1364 = vsel %vm273, %v1278, 0.0
    %1365 = vadd.xlane.f32.xlu0 %v1364
    %v1366 = vpop.xlane.xlu0 %1365
    %v1367 = vsel %vm273, %v1280, 0.0
    %1368 = vadd.xlane.f32.xlu0 %v1367
    %v1369 = vpop.xlane.xlu0 %1368
    %v1370 = vsel %vm273, %v1282, 0.0
    %1371 = vadd.xlane.f32.xlu0 %v1370
    %v1372 = vpop.xlane.xlu0 %1371
    %v1373 = vsel %vm273, %v1284, 0.0
    %1374 = vadd.xlane.f32.xlu0 %v1373
    %v1375 = vpop.xlane.xlu0 %1374
    %v1376 = vsel %vm273, %v1286, 0.0
    %1377 = vadd.xlane.f32.xlu0 %v1376
    %v1378 = vpop.xlane.xlu0 %1377
    %v1379 = vsel %vm273, %v1288, 0.0
    %1380 = vadd.xlane.f32.xlu0 %v1379
    %v1381 = vpop.xlane.xlu0 %1380
    %v1382 = vsel %vm273, %v1290, 0.0
    %1383 = vadd.xlane.f32.xlu0 %v1382
    %v1384 = vpop.xlane.xlu0 %1383
    %v1385 = vsel %vm273, %v1292, 0.0
    %1386 = vadd.xlane.f32.xlu0 %v1385
    %v1387 = vpop.xlane.xlu0 %1386
    %v1388 = vsel %vm273, %v1294, 0.0
    %1389 = vadd.xlane.f32.xlu0 %v1388
    %v1390 = vpop.xlane.xlu0 %1389
    %v1391 = vrcp.pop %v1297
    %v1392 = vmul.f32 %v1232, %v1391
    %v1393 = vrcp.pop %v1300
    %v1394 = vmul.f32 %v1234, %v1393
    %v1395 = vrcp.pop %v1303
    %v1396 = vmul.f32 %v1236, %v1395
    %v1397 = vrcp.pop %v1306
    %v1398 = vmul.f32 %v1238, %v1397
    %v1399 = vrcp.pop %v1309
    %v1400 = vmul.f32 %v1240, %v1399
    %v1401 = vrcp.pop %v1312
    %v1402 = vmul.f32 %v1242, %v1401
    %v1403 = vrcp.pop %v1315
    %v1404 = vmul.f32 %v1244, %v1403
    %v1405 = vrcp.pop %v1318
    %v1406 = vmul.f32 %v1246, %v1405
    %v1407 = vrcp.pop %v1321
    %v1408 = vmul.f32 %v1248, %v1407
    %v1409 = vrcp.pop %v1324
    %v1410 = vmul.f32 %v1250, %v1409
    %v1411 = vrcp.pop %v1327
    %v1412 = vmul.f32 %v1252, %v1411
    %v1413 = vrcp.pop %v1330
    %v1414 = vmul.f32 %v1254, %v1413
    %v1415 = vrcp.pop %v1333
    %v1416 = vmul.f32 %v1256, %v1415
    %v1417 = vrcp.pop %v1336
    %v1418 = vmul.f32 %v1258, %v1417
    %v1419 = vrcp.pop %v1339
    %v1420 = vmul.f32 %v1260, %v1419
    %v1421 = vrcp.pop %v1342
    %v1422 = vmul.f32 %v1262, %v1421
    %v1423 = vrcp.pop %v1345
    %v1424 = vmul.f32 %v1264, %v1423
    %v1425 = vrcp.pop %v1348
    %v1426 = vmul.f32 %v1266, %v1425
    %v1427 = vrcp.pop %v1351
    %v1428 = vmul.f32 %v1268, %v1427
    %v1429 = vrcp.pop %v1354
    %v1430 = vmul.f32 %v1270, %v1429
    %v1431 = vrcp.pop %v1357
    %v1432 = vmul.f32 %v1272, %v1431
    %v1433 = vrcp.pop %v1360
    %v1434 = vmul.f32 %v1274, %v1433
    %v1435 = vrcp.pop %v1363
    %v1436 = vmul.f32 %v1276, %v1435
    %v1437 = vrcp.pop %v1366
    %v1438 = vmul.f32 %v1278, %v1437
    %v1439 = vrcp.pop %v1369
    %v1440 = vmul.f32 %v1280, %v1439
    %v1441 = vrcp.pop %v1372
    %v1442 = vmul.f32 %v1282, %v1441
    %v1443 = vrcp.pop %v1375
    %v1444 = vmul.f32 %v1284, %v1443
    %v1445 = vrcp.pop %v1378
    %v1446 = vmul.f32 %v1286, %v1445
    %v1447 = vrcp.pop %v1381
    %v1448 = vmul.f32 %v1288, %v1447
    %v1449 = vrcp.pop %v1384
    %v1450 = vmul.f32 %v1290, %v1449
    %v1451 = vrcp.pop %v1387
    %v1452 = vmul.f32 %v1292, %v1451
    %v1453 = vrcp.pop %v1390
    %v1454 = vmul.f32 %v1294, %v1453
    %v1457 = vunpack.c.l.s4 1966171168
    %v1458 = vunpack.c.0.s8 %v1457
    %v1459 = vlaneseq
    %v1460 = vshrl.u32 %v1459, 7
    %v1461 = vsub.s32 %v1458, %v1460
    %v1462 = vrot.slane %v871, %v1461
    %v1463 = vcombine.high %v1462, %v1462
    %v1465 = vunpack.c.l.s4 1966171168
    %v1466 = vunpack.c.0.s8 %v1465
    %v1467 = vlaneseq
    %v1468 = vshrl.u32 %v1467, 7
    %v1469 = vsub.s32 %v1466, %v1468
    %v1470 = vrot.slane %v1462, %v1469
    %v1472 = vunpack.c.l.s4 1966171168
    %v1473 = vunpack.c.0.s8 %v1472
    %v1474 = vlaneseq
    %v1475 = vshrl.u32 %v1474, 7
    %v1476 = vsub.s32 %v1473, %v1475
    %v1477 = vrot.slane %v1463, %v1476
    %v1478 = vcombine.high %v1470, %v1470
    %v1479 = vcombine.high %v1477, %v1477
    %v1480 = vlaneseq
    %v1481 = vshrl.u32 %v1480, 7
    %v1482 = vsub.s32 0, %v1481
    %v1483 = vrot.slane %v1470, %v1482
    %v1484 = vlaneseq
    %v1485 = vshrl.u32 %v1484, 7
    %v1486 = vsub.s32 0, %v1485
    %v1487 = vrot.slane %v1477, %v1486
    %v1488 = vlaneseq
    %v1489 = vshrl.u32 %v1488, 7
    %v1490 = vsub.s32 0, %v1489
    %v1491 = vrot.slane %v1478, %v1490
    %v1492 = vlaneseq
    %v1493 = vshrl.u32 %v1492, 7
    %v1494 = vsub.s32 0, %v1493
    %v1495 = vrot.slane %v1479, %v1494
    %v1500 = vmul.f32 %v1392, %v1483
    %v1501 = vmul.f32 %v1394, %v1483
    %v1502 = vmul.f32 %v1396, %v1483
    %v1503 = vmul.f32 %v1398, %v1483
    %v1504 = vmul.f32 %v1400, %v1483
    %v1505 = vmul.f32 %v1402, %v1483
    %v1506 = vmul.f32 %v1404, %v1483
    %v1507 = vmul.f32 %v1406, %v1483
    %v1508 = vmul.f32 %v1408, %v1487
    %v1509 = vmul.f32 %v1410, %v1487
    %v1510 = vmul.f32 %v1412, %v1487
    %v1511 = vmul.f32 %v1414, %v1487
    %v1512 = vmul.f32 %v1416, %v1487
    %v1513 = vmul.f32 %v1418, %v1487
    %v1514 = vmul.f32 %v1420, %v1487
    %v1515 = vmul.f32 %v1422, %v1487
    %v1516 = vmul.f32 %v1424, %v1491
    %v1517 = vmul.f32 %v1426, %v1491
    %v1518 = vmul.f32 %v1428, %v1491
    %v1519 = vmul.f32 %v1430, %v1491
    %v1520 = vmul.f32 %v1432, %v1491
    %v1521 = vmul.f32 %v1434, %v1491
    %v1522 = vmul.f32 %v1436, %v1491
    %v1523 = vmul.f32 %v1438, %v1491
    %v1524 = vmul.f32 %v1440, %v1495
    %v1525 = vmul.f32 %v1442, %v1495
    %v1526 = vmul.f32 %v1444, %v1495
    %v1527 = vmul.f32 %v1446, %v1495
    %v1528 = vmul.f32 %v1448, %v1495
    %v1529 = vmul.f32 %v1450, %v1495
    %v1530 = vmul.f32 %v1452, %v1495
    %v1531 = vmul.f32 %v1454, %v1495
    %v1532 = vsel %vm273, %v1500, 0.0
    %1533 = vadd.xlane.f32.xlu0 %v1532
    %v1534 = vpop.xlane.xlu0 %1533
    %v1535 = vsel %vm273, %v1501, 0.0
    %1536 = vadd.xlane.f32.xlu0 %v1535
    %v1537 = vpop.xlane.xlu0 %1536
    %v1538 = vsel %vm273, %v1502, 0.0
    %1539 = vadd.xlane.f32.xlu0 %v1538
    %v1540 = vpop.xlane.xlu0 %1539
    %v1541 = vsel %vm273, %v1503, 0.0
    %1542 = vadd.xlane.f32.xlu0 %v1541
    %v1543 = vpop.xlane.xlu0 %1542
    %v1544 = vsel %vm273, %v1504, 0.0
    %1545 = vadd.xlane.f32.xlu0 %v1544
    %v1546 = vpop.xlane.xlu0 %1545
    %v1547 = vsel %vm273, %v1505, 0.0
    %1548 = vadd.xlane.f32.xlu0 %v1547
    %v1549 = vpop.xlane.xlu0 %1548
    %v1550 = vsel %vm273, %v1506, 0.0
    %1551 = vadd.xlane.f32.xlu0 %v1550
    %v1552 = vpop.xlane.xlu0 %1551
    %v1553 = vsel %vm273, %v1507, 0.0
    %1554 = vadd.xlane.f32.xlu0 %v1553
    %v1555 = vpop.xlane.xlu0 %1554
    %v1556 = vsel %vm273, %v1508, 0.0
    %1557 = vadd.xlane.f32.xlu0 %v1556
    %v1558 = vpop.xlane.xlu0 %1557
    %v1559 = vsel %vm273, %v1509, 0.0
    %1560 = vadd.xlane.f32.xlu0 %v1559
    %v1561 = vpop.xlane.xlu0 %1560
    %v1562 = vsel %vm273, %v1510, 0.0
    %1563 = vadd.xlane.f32.xlu0 %v1562
    %v1564 = vpop.xlane.xlu0 %1563
    %v1565 = vsel %vm273, %v1511, 0.0
    %1566 = vadd.xlane.f32.xlu0 %v1565
    %v1567 = vpop.xlane.xlu0 %1566
    %v1568 = vsel %vm273, %v1512, 0.0
    %1569 = vadd.xlane.f32.xlu0 %v1568
    %v1570 = vpop.xlane.xlu0 %1569
    %v1571 = vsel %vm273, %v1513, 0.0
    %1572 = vadd.xlane.f32.xlu0 %v1571
    %v1573 = vpop.xlane.xlu0 %1572
    %v1574 = vsel %vm273, %v1514, 0.0
    %1575 = vadd.xlane.f32.xlu0 %v1574
    %v1576 = vpop.xlane.xlu0 %1575
    %v1577 = vsel %vm273, %v1515, 0.0
    %1578 = vadd.xlane.f32.xlu0 %v1577
    %v1579 = vpop.xlane.xlu0 %1578
    %v1580 = vsel %vm273, %v1516, 0.0
    %1581 = vadd.xlane.f32.xlu0 %v1580
    %v1582 = vpop.xlane.xlu0 %1581
    %v1583 = vsel %vm273, %v1517, 0.0
    %1584 = vadd.xlane.f32.xlu0 %v1583
    %v1585 = vpop.xlane.xlu0 %1584
    %v1586 = vsel %vm273, %v1518, 0.0
    %1587 = vadd.xlane.f32.xlu0 %v1586
    %v1588 = vpop.xlane.xlu0 %1587
    %v1589 = vsel %vm273, %v1519, 0.0
    %1590 = vadd.xlane.f32.xlu0 %v1589
    %v1591 = vpop.xlane.xlu0 %1590
    %v1592 = vsel %vm273, %v1520, 0.0
    %1593 = vadd.xlane.f32.xlu0 %v1592
    %v1594 = vpop.xlane.xlu0 %1593
    %v1595 = vsel %vm273, %v1521, 0.0
    %1596 = vadd.xlane.f32.xlu0 %v1595
    %v1597 = vpop.xlane.xlu0 %1596
    %v1598 = vsel %vm273, %v1522, 0.0
    %1599 = vadd.xlane.f32.xlu0 %v1598
    %v1600 = vpop.xlane.xlu0 %1599
    %v1601 = vsel %vm273, %v1523, 0.0
    %1602 = vadd.xlane.f32.xlu0 %v1601
    %v1603 = vpop.xlane.xlu0 %1602
    %v1604 = vsel %vm273, %v1524, 0.0
    %1605 = vadd.xlane.f32.xlu0 %v1604
    %v1606 = vpop.xlane.xlu0 %1605
    %v1607 = vsel %vm273, %v1525, 0.0
    %1608 = vadd.xlane.f32.xlu0 %v1607
    %v1609 = vpop.xlane.xlu0 %1608
    %v1610 = vsel %vm273, %v1526, 0.0
    %1611 = vadd.xlane.f32.xlu0 %v1610
    %v1612 = vpop.xlane.xlu0 %1611
    %v1613 = vsel %vm273, %v1527, 0.0
    %1614 = vadd.xlane.f32.xlu0 %v1613
    %v1615 = vpop.xlane.xlu0 %1614
    %v1616 = vsel %vm273, %v1528, 0.0
    %1617 = vadd.xlane.f32.xlu0 %v1616
    %v1618 = vpop.xlane.xlu0 %1617
    %v1619 = vsel %vm273, %v1529, 0.0
    %1620 = vadd.xlane.f32.xlu0 %v1619
    %v1621 = vpop.xlane.xlu0 %1620
    %v1622 = vsel %vm273, %v1530, 0.0
    %1623 = vadd.xlane.f32.xlu0 %v1622
    %v1624 = vpop.xlane.xlu0 %1623
    %v1625 = vsel %vm273, %v1531, 0.0
    %1626 = vadd.xlane.f32.xlu0 %v1625
    %v1627 = vpop.xlane.xlu0 %1626
    %v1660 = vlaneseq
    %v1661 = vand.u32 %v1660, 127
    %v1662 = vlaneseq
    %v1663 = vshrl.u32 %v1662, 7
    %v1664 = vsub.s32 %v1661, %v1663
    %v1665 = vrot.slane %v1534, %v1664
    %v1666 = vadd.s32 %v1661, 4294967288
    %v1667 = vlaneseq
    %v1668 = vshrl.u32 %v1667, 7
    %v1669 = vsub.s32 %v1666, %v1668
    %v1670 = vrot.slane %v1537, %v1669
    %vm1671 = vcmask 130112
    %v1672 = vsel %vm1671, %v1670, %v1665
    %v1673 = vadd.s32 %v1661, 4294967280
    %v1674 = vlaneseq
    %v1675 = vshrl.u32 %v1674, 7
    %v1676 = vsub.s32 %v1673, %v1675
    %v1677 = vrot.slane %v1540, %v1676
    %vm1678 = vcmask 195712
    %v1679 = vsel %vm1678, %v1677, %v1672
    %v1680 = vadd.s32 %v1661, 4294967272
    %v1681 = vlaneseq
    %v1682 = vshrl.u32 %v1681, 7
    %v1683 = vsub.s32 %v1680, %v1682
    %v1684 = vrot.slane %v1543, %v1683
    %vm1685 = vcmask 261312
    %v1686 = vsel %vm1685, %v1684, %v1679
    %v1687 = vadd.s32 %v1661, 4294967264
    %v1688 = vlaneseq
    %v1689 = vshrl.u32 %v1688, 7
    %v1690 = vsub.s32 %v1687, %v1689
    %v1691 = vrot.slane %v1546, %v1690
    %vm1692 = vcmask 326912
    %v1693 = vsel %vm1692, %v1691, %v1686
    %v1694 = vadd.s32 %v1661, 4294967256
    %v1695 = vlaneseq
    %v1696 = vshrl.u32 %v1695, 7
    %v1697 = vsub.s32 %v1694, %v1696
    %v1698 = vrot.slane %v1549, %v1697
    %vm1699 = vcmask 392512
    %v1700 = vsel %vm1699, %v1698, %v1693
    %v1701 = vadd.s32 %v1661, 4294967248
    %v1702 = vlaneseq
    %v1703 = vshrl.u32 %v1702, 7
    %v1704 = vsub.s32 %v1701, %v1703
    %v1705 = vrot.slane %v1552, %v1704
    %vm1706 = vcmask 458112
    %v1707 = vsel %vm1706, %v1705, %v1700
    %v1708 = vadd.s32 %v1661, 4294967240
    %v1709 = vlaneseq
    %v1710 = vshrl.u32 %v1709, 7
    %v1711 = vsub.s32 %v1708, %v1710
    %v1712 = vrot.slane %v1555, %v1711
    %vm1713 = vcmask 523712
    %v1714 = vsel %vm1713, %v1712, %v1707
    %v1715 = vlaneseq
    %v1716 = vshrl.u32 %v1715, 7
    %v1717 = vsub.s32 %v1661, %v1716
    %v1718 = vrot.slane %v1558, %v1717
    %v1719 = vlaneseq
    %v1720 = vshrl.u32 %v1719, 7
    %v1721 = vsub.s32 %v1666, %v1720
    %v1722 = vrot.slane %v1561, %v1721
    %v1723 = vsel %vm1671, %v1722, %v1718
    %v1724 = vlaneseq
    %v1725 = vshrl.u32 %v1724, 7
    %v1726 = vsub.s32 %v1673, %v1725
    %v1727 = vrot.slane %v1564, %v1726
    %v1728 = vsel %vm1678, %v1727, %v1723
    %v1729 = vlaneseq
    %v1730 = vshrl.u32 %v1729, 7
    %v1731 = vsub.s32 %v1680, %v1730
    %v1732 = vrot.slane %v1567, %v1731
    %v1733 = vsel %vm1685, %v1732, %v1728
    %v1734 = vlaneseq
    %v1735 = vshrl.u32 %v1734, 7
    %v1736 = vsub.s32 %v1687, %v1735
    %v1737 = vrot.slane %v1570, %v1736
    %v1738 = vsel %vm1692, %v1737, %v1733
    %v1739 = vlaneseq
    %v1740 = vshrl.u32 %v1739, 7
    %v1741 = vsub.s32 %v1694, %v1740
    %v1742 = vrot.slane %v1573, %v1741
    %v1743 = vsel %vm1699, %v1742, %v1738
    %v1744 = vlaneseq
    %v1745 = vshrl.u32 %v1744, 7
    %v1746 = vsub.s32 %v1701, %v1745
    %v1747 = vrot.slane %v1576, %v1746
    %v1748 = vsel %vm1706, %v1747, %v1743
    %v1749 = vlaneseq
    %v1750 = vshrl.u32 %v1749, 7
    %v1751 = vsub.s32 %v1708, %v1750
    %v1752 = vrot.slane %v1579, %v1751
    %v1753 = vsel %vm1713, %v1752, %v1748
    %v1754 = vlaneseq
    %v1755 = vshrl.u32 %v1754, 7
    %v1756 = vsub.s32 %v1661, %v1755
    %v1757 = vrot.slane %v1582, %v1756
    %v1758 = vlaneseq
    %v1759 = vshrl.u32 %v1758, 7
    %v1760 = vsub.s32 %v1666, %v1759
    %v1761 = vrot.slane %v1585, %v1760
    %v1762 = vsel %vm1671, %v1761, %v1757
    %v1763 = vlaneseq
    %v1764 = vshrl.u32 %v1763, 7
    %v1765 = vsub.s32 %v1673, %v1764
    %v1766 = vrot.slane %v1588, %v1765
    %v1767 = vsel %vm1678, %v1766, %v1762
    %v1768 = vlaneseq
    %v1769 = vshrl.u32 %v1768, 7
    %v1770 = vsub.s32 %v1680, %v1769
    %v1771 = vrot.slane %v1591, %v1770
    %v1772 = vsel %vm1685, %v1771, %v1767
    %v1773 = vlaneseq
    %v1774 = vshrl.u32 %v1773, 7
    %v1775 = vsub.s32 %v1687, %v1774
    %v1776 = vrot.slane %v1594, %v1775
    %v1777 = vsel %vm1692, %v1776, %v1772
    %v1778 = vlaneseq
    %v1779 = vshrl.u32 %v1778, 7
    %v1780 = vsub.s32 %v1694, %v1779
    %v1781 = vrot.slane %v1597, %v1780
    %v1782 = vsel %vm1699, %v1781, %v1777
    %v1783 = vlaneseq
    %v1784 = vshrl.u32 %v1783, 7
    %v1785 = vsub.s32 %v1701, %v1784
    %v1786 = vrot.slane %v1600, %v1785
    %v1787 = vsel %vm1706, %v1786, %v1782
    %v1788 = vlaneseq
    %v1789 = vshrl.u32 %v1788, 7
    %v1790 = vsub.s32 %v1708, %v1789
    %v1791 = vrot.slane %v1603, %v1790
    %v1792 = vsel %vm1713, %v1791, %v1787
    %v1793 = vlaneseq
    %v1794 = vshrl.u32 %v1793, 7
    %v1795 = vsub.s32 %v1661, %v1794
    %v1796 = vrot.slane %v1606, %v1795
    %v1797 = vlaneseq
    %v1798 = vshrl.u32 %v1797, 7
    %v1799 = vsub.s32 %v1666, %v1798
    %v1800 = vrot.slane %v1609, %v1799
    %v1801 = vsel %vm1671, %v1800, %v1796
    %v1802 = vlaneseq
    %v1803 = vshrl.u32 %v1802, 7
    %v1804 = vsub.s32 %v1673, %v1803
    %v1805 = vrot.slane %v1612, %v1804
    %v1806 = vsel %vm1678, %v1805, %v1801
    %v1807 = vlaneseq
    %v1808 = vshrl.u32 %v1807, 7
    %v1809 = vsub.s32 %v1680, %v1808
    %v1810 = vrot.slane %v1615, %v1809
    %v1811 = vsel %vm1685, %v1810, %v1806
    %v1812 = vlaneseq
    %v1813 = vshrl.u32 %v1812, 7
    %v1814 = vsub.s32 %v1687, %v1813
    %v1815 = vrot.slane %v1618, %v1814
    %v1816 = vsel %vm1692, %v1815, %v1811
    %v1817 = vlaneseq
    %v1818 = vshrl.u32 %v1817, 7
    %v1819 = vsub.s32 %v1694, %v1818
    %v1820 = vrot.slane %v1621, %v1819
    %v1821 = vsel %vm1699, %v1820, %v1816
    %v1822 = vlaneseq
    %v1823 = vshrl.u32 %v1822, 7
    %v1824 = vsub.s32 %v1701, %v1823
    %v1825 = vrot.slane %v1624, %v1824
    %v1826 = vsel %vm1706, %v1825, %v1821
    %v1827 = vlaneseq
    %v1828 = vshrl.u32 %v1827, 7
    %v1829 = vsub.s32 %v1708, %v1828
    %v1830 = vrot.slane %v1627, %v1829
    %v1831 = vsel %vm1713, %v1830, %v1826
    %vm1832 = vcmask 1041409
    %v1833 = vsel %vm1832, %v1753, %v1714
    %vm1834 = vcmask 1042434
    %v1835 = vsel %vm1834, %v1792, %v1833
    %vm1836 = vcmask 1043459
    %v1837 = vsel %vm1836, %v1831, %v1835
    %vm1839 = vcmask 519168
    %1840 = vst.msk [vmem:[#allocation25] sm:$0xf] %vm1839, %v1837
    // Predicated region
    $region130: #{tpu_custom_call.1} parent=1 // pred_check
      _
    $region131: #{tpu_custom_call.1} parent=1 // pred_check_branch
      %1842 = sbr.rel (0) target = $region133
    $region132: #{tpu_custom_call.1} parent=1 // pred_region
      %s1844 = ssub.s32 64, 64
      %1845 = vsyncadd [#allocation4], %s1844
      %s1847 = sshll.u32 [#allocation25], 4
      %s1848 = int_to_ptr.vmem [resolvable:$true] %s1847
      %1850 = dma.vmem_to_hbm [thread:$0]  %s1848, 64, %s18, [#allocation4]
    $region133: #{tpu_custom_call.1} parent=1 // pred_fallthru
      _
    // Predicated region
    $region134: #{tpu_custom_call.1} parent=1 // pred_check
      _
    $region135: #{tpu_custom_call.1} parent=1 // pred_check_branch
      %1852 = sbr.rel (0) target = $region137
    $region136: #{tpu_custom_call.1} parent=1 // pred_region
      %1853 = dma.done [#allocation4], 64
    $region137: #{tpu_custom_call.1} parent=1 // pred_fallthru
      _
    %1854 = vsyncpa [#allocation3], 1
    %1855 = vsyncpa [#allocation6], 1
    %1856 = vsyncpa [#allocation9], 1
    %1857 = vsyncpa [#allocation12], 1
    %1858 = vsyncpa [#allocation15], 1
    %1859 = vsyncpa [#allocation18], 1
    %1860 = vsyncpa [#allocation21], 1
    %1861 = vsyncpa [#allocation24], 1
    %1862 = vsyncpa [#allocation4], 1

</llo_original>
